<compile_context>
chip_gen: v7x
topology: tpu7x:2x2x1
jax: 0.10.0
libtpu: 0.0.40
codegen_flags: <defaults>
</compile_context>

<pallas_src>
import math
from functools import partial

import jax
import jax.numpy as jnp
from jax.experimental import pallas as pl
from jax.experimental.pallas import tpu as pltpu


def _round_up(x, m):
    return ((x + m - 1) // m) * m


def _pick_tile(total, max_tile, align):
    """Largest divisor of `total` <= max_tile that is a multiple of `align`.
    `total` must already be a multiple of `align`."""
    best = align
    cand = align
    limit = min(max_tile, total)
    while cand <= limit:
        if total % cand == 0:
            best = cand
        cand += align
    return best


# ----------------------------------------------------------------------------
# Kernel 1: generic tiled linear  y = x @ W + b   (decoder, pointer q|v proj)
#   Weights arrive pre-transposed, pre-padded to a 128-lane multiple and bf16.
# ----------------------------------------------------------------------------
def _linear_kernel(x_ref, w_ref, b_ref, o_ref):
    xb = x_ref[...].astype(jnp.bfloat16)          # bf16 MXU operands, f32 accumulate
    o_ref[...] = (jnp.dot(xb, w_ref[...], preferred_element_type=jnp.float32)
                  + b_ref[...])


def linear_bias(x2d, w_bf, b_row, out_cols, *, tile_n=1024, tile_m=512):
    """x2d: (N, K) f32; w_bf: (K, Mp) bf16 (Mp % 128 == 0, pre-padded);
    b_row: (1, Mp) f32.  Returns (N, out_cols) f32.

    Rows and output columns are tiled; all output stores are lane-dense.  K is
    kept whole per block (no K tiling needed at these sizes).
    """
    N, K = x2d.shape
    Mp = w_bf.shape[1]
    Np = _round_up(N, 8)
    TN = _pick_tile(Np, tile_n, 8)
    TM = _pick_tile(Mp, tile_m, 128)
    if Np != N:
        x2d = jnp.pad(x2d, ((0, Np - N), (0, 0)))

    out = pl.pallas_call(
        _linear_kernel,
        out_shape=jax.ShapeDtypeStruct((Np, Mp), jnp.float32),
        grid_spec=pltpu.PrefetchScalarGridSpec(
            num_scalar_prefetch=0,
            grid=(Np // TN, Mp // TM),
            in_specs=[
                pl.BlockSpec((TN, K), lambda n, m: (n, 0)),
                pl.BlockSpec((K, TM), lambda n, m: (0, m)),
                pl.BlockSpec((1, TM), lambda n, m: (0, m)),
            ],
            out_specs=pl.BlockSpec((TN, TM), lambda n, m: (n, m))),
        compiler_params=pltpu.CompilerParams(
            dimension_semantics=("parallel", "parallel")),
    )(x2d, w_bf, b_row)
    return out[:N, :out_cols]


# ----------------------------------------------------------------------------
# Kernel 2: fused LSTM layer (input projection + recurrence), time-chunked.
#   PyTorch gate order [i; f; g; o] is concatenated along the lane axis (4H).
#   Per chunk: one (Ts*B, In)x(In,4H) bf16 matmul for gates_x into VMEM scratch,
#   then a fori_loop recurrence with ONE bf16 (B,H)x(H,4H) matmul per timestep.
# ----------------------------------------------------------------------------
def _lstm_chunk_kernel(x_ref, wih_ref, whh_ref, b_ref, h0_ref, c0_ref,
                       y_ref, hf_ref, cf_ref,
                       h_sc, c_sc, gx_sc, *, seq_len, hid, mask_tail):
    tc = pl.program_id(0)
    Ts, B, In = x_ref.shape
    H = hid

    @pl.when(tc == 0)
    def _():
        h_sc[...] = h0_ref[...]
        c_sc[...] = c0_ref[...]

    # Input projection for this chunk (off the sequential critical path).
    xb = x_ref[...].reshape(Ts * B, In).astype(jnp.bfloat16)
    gx = jnp.dot(xb, wih_ref[...], preferred_element_type=jnp.float32) + b_ref[...]
    gx_sc[...] = gx.reshape(Ts, B, 4 * H)

    whh = whh_ref[...]                            # (H, 4H) bf16, loop-invariant

    def step(t, carry):
        h, c = carry
        z = gx_sc[t] + jnp.dot(h.astype(jnp.bfloat16), whh,
                               preferred_element_type=jnp.float32)   # (B, 4H)
        i_g = jax.nn.sigmoid(z[:, 0 * H:1 * H])
        f_g = jax.nn.sigmoid(z[:, 1 * H:2 * H])
        g_g = jnp.tanh(z[:, 2 * H:3 * H])
        o_g = jax.nn.sigmoid(z[:, 3 * H:4 * H])
        c_new = f_g * c + i_g * g_g
        h_new = o_g * jnp.tanh(c_new)
        if mask_tail:
            valid = (tc * Ts + t) < seq_len       # keep carries exact past padded tail
            h_new = jnp.where(valid, h_new, h)
            c_new = jnp.where(valid, c_new, c)
        y_ref[t] = h_new                          # VMEM store; chunk written back as a slab
        return (h_new, c_new)

    h_f, c_f = jax.lax.fori_loop(0, Ts, step, (h_sc[...], c_sc[...]),
                                 unroll=(Ts if Ts <= 16 else 8))
    h_sc[...] = h_f
    c_sc[...] = c_f

    @pl.when(tc == pl.num_programs(0) - 1)
    def _():
        hf_ref[...] = h_f                         # final states written exactly once
        cf_ref[...] = c_f


def lstm_layer(x, wih, whh, bias, h0, c0, *, seq_len, time_chunk):
    """x: (Sp, B, In) f32 (Sp padded to a multiple of time_chunk).
    Returns y: (Sp, B, H), h_final/c_final: (B, H)."""
    Sp, B, In = x.shape
    H = whh.shape[0]
    Ts = time_chunk
    n_chunks = Sp // Ts
    kern = partial(_lstm_chunk_kernel, seq_len=seq_len, hid=H,
                   mask_tail=(Sp != seq_len))
    # TODO(synk): at realistic (S, B, H) also size Ts against the per-chip VMEM
    # budget (x/y chunk blocks double-buffered + (Ts, B, 4H) f32 scratch).
    y, hf, cf = pl.pallas_call(
        kern,
        out_shape=(jax.ShapeDtypeStruct((Sp, B, H), jnp.float32),
                   jax.ShapeDtypeStruct((B, H), jnp.float32),
                   jax.ShapeDtypeStruct((B, H), jnp.float32)),
        grid_spec=pltpu.PrefetchScalarGridSpec(
            num_scalar_prefetch=0,
            grid=(n_chunks,),
            in_specs=[
                pl.BlockSpec((Ts, B, In), lambda t: (t, 0, 0)),   # streamed per chunk
                pl.BlockSpec((In, 4 * H), lambda t: (0, 0)),       # resident weights
                pl.BlockSpec((H, 4 * H), lambda t: (0, 0)),
                pl.BlockSpec((1, 4 * H), lambda t: (0, 0)),
                pl.BlockSpec((B, H), lambda t: (0, 0)),
                pl.BlockSpec((B, H), lambda t: (0, 0)),
            ],
            out_specs=(pl.BlockSpec((Ts, B, H), lambda t: (t, 0, 0)),
                       pl.BlockSpec((B, H), lambda t: (0, 0)),
                       pl.BlockSpec((B, H), lambda t: (0, 0))),
            scratch_shapes=[pltpu.VMEM((B, H), jnp.float32),          # h carry
                            pltpu.VMEM((B, H), jnp.float32),          # c carry
                            pltpu.VMEM((Ts, B, 4 * H), jnp.float32)]),  # gates_x chunk
        compiler_params=pltpu.CompilerParams(
            dimension_semantics=("arbitrary",)),
    )(x, wih, whh, bias, h0, c0)
    return y, hf, cf


# ----------------------------------------------------------------------------
# Kernel 3: dependency pointer attention.
#   att[b,i,j] = (q[b,i] . v[b,j]) / sqrt(D), causal mask (j > i -> -inf),
#   softmax over last dim.  q and v arrive concatenated on the lane axis and
#   are split inside the block (no host-side non-aligned column slices).
# ----------------------------------------------------------------------------
def _pointer_kernel(qv_ref, o_ref, *, d):
    x = qv_ref[...]                                             # (Bt, S, >=2d)
    q = x[:, :, :d].astype(jnp.bfloat16)
    v = x[:, :, d:2 * d].astype(jnp.bfloat16)
    S = x.shape[1]
    att = jnp.einsum('bqd,bkd->bqk', q, v,
                     preferred_element_type=jnp.float32) * (1.0 / math.sqrt(d))
    row = jax.lax.broadcasted_iota(jnp.int32, (1, S, S), 1)
    col = jax.lax.broadcasted_iota(jnp.int32, (1, S, S), 2)
    att = jnp.where(col > row, -jnp.inf, att)
    att = att - jnp.max(att, axis=-1, keepdims=True)
    e = jnp.exp(att)
    denom = jnp.sum(e, axis=-1, keepdims=True)
    o_ref[...] = e * pl.reciprocal(denom, approx=True)          # EUP divide


def pointer_attention(qv, d, *, vmem_budget_bytes=16 * 1024 * 1024):
    """qv: (B, S, P) f32 with q in cols [:d], v in cols [d:2d] (P % 128 == 0).
    Returns (B, S, S) causal softmax weights."""
    B, S, P = qv.shape
    # Double-buffered input + output block bytes per batch row.
    per_row = 2 * (S * P * 4 + S * S * 4)
    Bt = max(1, min(B, vmem_budget_bytes // max(per_row, 1)))
    # TODO(synk): on v7x (2 TCs, 64 MiB VMEM) cap Bt so there are >=2 parallel
    # grid steps; on single-TC v5e/v6e one grid step is cheapest when it fits.
    nb = int(pl.cdiv(B, Bt))
    Bp = nb * Bt
    if Bp != B:
        qv = jnp.pad(qv, ((0, Bp - B), (0, 0), (0, 0)))
    out = pl.pallas_call(
        partial(_pointer_kernel, d=d),
        out_shape=jax.ShapeDtypeStruct((Bp, S, S), jnp.float32),
        grid_spec=pltpu.PrefetchScalarGridSpec(
            num_scalar_prefetch=0,
            grid=(nb,),
            in_specs=[pl.BlockSpec((Bt, S, P), lambda b: (b, 0, 0))],
            out_specs=pl.BlockSpec((Bt, S, S), lambda b: (b, 0, 0))),
        compiler_params=pltpu.CompilerParams(
            dimension_semantics=("parallel",)),
    )(qv)
    return out[:B]


# ----------------------------------------------------------------------------
# Parameter construction (matches __init__ shapes & init ranges, PyTorch layout)
# ----------------------------------------------------------------------------
def make_params(key, ntoken, ninp, nhid, nlayers):
    initrange = 0.1
    keys = jax.random.split(key, 4 + nlayers)
    p = {
        "encoder_w": jax.random.uniform(keys[0], (ntoken, ninp), jnp.float32,
                                        -initrange, initrange),
        "decoder_w": jax.random.uniform(keys[1], (ntoken, nhid), jnp.float32,
                                        -initrange, initrange),
        "decoder_b": jnp.zeros((ntoken,), jnp.float32),
        "query_w": jax.random.uniform(keys[2], (ninp, ninp), jnp.float32,
                                      -initrange, initrange),
        "query_b": jnp.zeros((ninp,), jnp.float32),
        "value_w": jax.random.uniform(keys[3], (ninp, ninp), jnp.float32,
                                      -initrange, initrange),
        "value_b": jnp.zeros((ninp,), jnp.float32),
        "lstm": [],
    }
    for l in range(nlayers):
        in_size = ninp if l == 0 else nhid
        hid = nhid                 # tie_weights=False -> every layer uses nhid
        k = 1.0 / math.sqrt(hid)
        kk = jax.random.split(keys[4 + l], 4)
        p["lstm"].append({
            "w_ih": jax.random.uniform(kk[0], (4 * hid, in_size), jnp.float32, -k, k),
            "w_hh": jax.random.uniform(kk[1], (4 * hid, hid), jnp.float32, -k, k),
            "b_ih": jax.random.uniform(kk[2], (4 * hid,), jnp.float32, -k, k),
            "b_hh": jax.random.uniform(kk[3], (4 * hid,), jnp.float32, -k, k),
        })
    return p


def prepare_params(p):
    """One-time weight relayout: gate-concat transposes, bf16 casts, decoder
    transpose + lane padding, [Wq|Wv] concat + lane padding.  Runs once, not
    inside the per-step forward."""
    ntoken, ninp = p["encoder_w"].shape
    out = {"encoder_w": p["encoder_w"], "lstm": []}
    for lp in p["lstm"]:
        H = lp["w_hh"].shape[1]
        out["lstm"].append({
            # PyTorch (4H, In)/(4H, H) gate rows [i; f; g; o] -> (In, 4H)/(H, 4H)
            # with gates concatenated along lanes in the same order.
            "wih": jnp.transpose(lp["w_ih"]).astype(jnp.bfloat16),
            "whh": jnp.transpose(lp["w_hh"]).astype(jnp.bfloat16),
            "bias": (lp["b_ih"] + lp["b_hh"]).reshape(1, 4 * H).astype(jnp.float32),
        })
    # decoder: (H, ntoken) padded to a 128-lane multiple, streamed as bf16.
    Vp = _round_up(ntoken, 128)
    dec_wt = jnp.pad(jnp.transpose(p["decoder_w"]), ((0, 0), (0, Vp - ntoken)))
    out["dec_w"] = dec_wt.astype(jnp.bfloat16)
    out["dec_b"] = jnp.pad(p["decoder_b"], (0, Vp - ntoken)).reshape(1, Vp)
    # pointer q/v: concatenated [Wq | Wv] (D, 2D), padded to a 128-lane multiple.
    D = ninp
    P2D = _round_up(2 * D, 128)
    wqv = jnp.concatenate([jnp.transpose(p["query_w"]),
                           jnp.transpose(p["value_w"])], axis=1)
    out["wqv"] = jnp.pad(wqv, ((0, 0), (0, P2D - 2 * D))).astype(jnp.bfloat16)
    out["bqv"] = jnp.pad(jnp.concatenate([p["query_b"], p["value_b"]]),
                         (0, P2D - 2 * D)).reshape(1, P2D)
    return out


# ----------------------------------------------------------------------------
# Forward pass (eval mode, is_train_dependency=False, context_length=-1)
# ----------------------------------------------------------------------------
@partial(jax.jit, static_argnames=("time_chunk",))
def dp_rnn_forward(prepped, tokens, hidden, *, time_chunk=32):
    S, B = tokens.shape
    nlayers = len(prepped["lstm"])
    ntoken, ninp = prepped["encoder_w"].shape

    # Embedding lookup kept as plain-JAX glue (gather); dropouts are identity in eval.
    emb = jnp.take(prepped["encoder_w"], tokens, axis=0)      # (S, B, ninp)

    Ts = min(time_chunk, S)
    Sp = _round_up(S, Ts)
    if Sp != S:
        emb = jnp.pad(emb, ((0, Sp - S), (0, 0), (0, 0)))     # padded tail masked in-kernel

    raw = emb
    new_hidden = []
    for l in range(nlayers):
        lp = prepped["lstm"][l]
        h0, c0 = hidden[l]
        y, h_f, c_f = lstm_layer(raw, lp["wih"], lp["whh"], lp["bias"],
                                 h0[0], c0[0], seq_len=S, time_chunk=Ts)
        new_hidden.append((h_f[None], c_f[None]))             # (1, B, H) like PyTorch
        raw = y

    output = raw[:S]                                          # dropout identity in eval
    H = output.shape[-1]

    # decoder(output): (S, B, ntoken) — tiled, vocab pre-padded to 128 lanes.
    logits = linear_bias(output.reshape(S * B, H), prepped["dec_w"],
                         prepped["dec_b"], ntoken)
    logits = logits.reshape(S, B, ntoken)

    # _pointer(raw_outputs[-1], output, -1): both operands are the same tensor
    # in eval mode, so project once with the concatenated [Wq | Wv] weights and
    # keep q|v fused on the lane axis all the way into the pointer kernel.
    x_bf = jnp.transpose(output, (1, 0, 2))                   # (B, S, D)
    D = ninp
    P2D = prepped["wqv"].shape[1]
    qv = linear_bias(x_bf.reshape(B * S, D), prepped["wqv"], prepped["bqv"], P2D)
    qv = qv.reshape(B, S, P2D)
    dep_attn = pointer_attention(qv, D)                       # (B, S, S)

    return logits, dep_attn, new_hidden


if __name__ == "__main__":
    ntoken, ninp, nhid, nlayers = 50, 64, 64, 2
    seq_len, batch = 8, 2

    key = jax.random.PRNGKey(0)
    pkey, tkey = jax.random.split(key)
    params = make_params(pkey, ntoken, ninp, nhid, nlayers)
    prepped = prepare_params(params)                          # one-time relayout

    tokens = jax.random.randint(tkey, (seq_len, batch), 0, ntoken, dtype=jnp.int32)
    hidden = [(jnp.zeros((1, batch, nhid), jnp.float32),
               jnp.zeros((1, batch, nhid), jnp.float32)) for _ in range(nlayers)]

    # time_chunk=4 -> 2 grid chunks: exercises the chunked-recurrence carry path.
    logits, dep_attn, new_hidden = dp_rnn_forward(prepped, tokens, hidden,
                                                  time_chunk=4)
    jax.block_until_ready((logits, dep_attn, new_hidden))

    assert logits.shape == (seq_len, batch, ntoken)
    assert dep_attn.shape == (batch, seq_len, seq_len)
    assert new_hidden[0][0].shape == (1, batch, nhid)
    assert new_hidden[-1][1].shape == (1, batch, nhid)
    # softmax rows sum to ~1 (approx reciprocal => loose tol) and are finite
    row_sums = jnp.sum(dep_attn, axis=-1)
    assert jnp.allclose(row_sums, 1.0, atol=2e-3)
    # strictly-upper-triangular (future) positions must be masked to zero
    triu = jnp.triu(jnp.ones((seq_len, seq_len), jnp.float32), 1).astype(bool)
    assert float(jnp.max(jnp.abs(jnp.where(triu[None], dep_attn, 0.0)))) <= 1e-6
    assert bool(jnp.all(jnp.isfinite(logits)))
    assert bool(jnp.all(jnp.isfinite(dep_attn)))
    assert bool(jnp.all(jnp.isfinite(new_hidden[-1][0])))

    print("KERNEL_OK")
</pallas_src>

<mosaic_0001>
module attributes {stable_mosaic.version = 11 : i64} {
  func.func @_linear_kernel(%arg0: i32, %arg1: i32, %arg2: memref<16x64xf32, #tpu.memory_space<vmem>>, %arg3: memref<64x128xbf16, #tpu.memory_space<vmem>>, %arg4: memref<1x128xf32, #tpu.memory_space<vmem>>, %arg5: memref<16x128xf32, #tpu.memory_space<vmem>>) attributes {dimension_semantics = [#tpu.dimension_semantics<parallel>, #tpu.dimension_semantics<parallel>], iteration_bounds = array<i64: 1, 1>, scalar_prefetch = 0 : i64, scratch_operands = 0 : i64, tpu.core_type = #tpu.core_type<tc>, window_params = [{transform_indices = @transform_0, window_bounds = array<i64: 16, 64>}, {transform_indices = @transform_1, window_bounds = array<i64: 64, 128>}, {transform_indices = @transform_2, window_bounds = array<i64: 1, 128>}, {transform_indices = @transform_3, window_bounds = array<i64: 16, 128>}]} {
    %c0 = arith.constant 0 : index
    %c0_0 = arith.constant 0 : index
    %0 = vector.load %arg2[%c0, %c0_0] : memref<16x64xf32, #tpu.memory_space<vmem>>, vector<16x64xf32>
    %1 = arith.truncf %0 : vector<16x64xf32> to vector<16x64xbf16>
    %c0_1 = arith.constant 0 : index
    %c0_2 = arith.constant 0 : index
    %2 = vector.load %arg3[%c0_1, %c0_2] : memref<64x128xbf16, #tpu.memory_space<vmem>>, vector<64x128xbf16>
    %cst = arith.constant dense<0.000000e+00> : vector<16x128xf32>
    %3 = tpu.matmul %1, %2, %cst {dimension_numbers = #tpu.dot_dimension_numbers<[1], [0], [0], [1], [0, 0, 1, 1], [], []>} : vector<16x64xbf16>, vector<64x128xbf16>, vector<16x128xf32> -> vector<16x128xf32>
    %c0_3 = arith.constant 0 : index
    %c0_4 = arith.constant 0 : index
    %4 = vector.load %arg4[%c0_3, %c0_4] : memref<1x128xf32, #tpu.memory_space<vmem>>, vector<1x128xf32>
    %5 = vector.broadcast %4 : vector<1x128xf32> to vector<16x128xf32>
    %6 = arith.addf %3, %5 : vector<16x128xf32>
    %c0_5 = arith.constant 0 : index
    %c0_6 = arith.constant 0 : index
    %7 = vector.load %arg5[%c0_5, %c0_6] : memref<16x128xf32, #tpu.memory_space<vmem>>, vector<16x128xf32>
    tpu.vector_store %arg5[%c0_5, %c0_6], %6 {strides = array<i32>} : memref<16x128xf32, #tpu.memory_space<vmem>>, vector<16x128xf32>,
    return
  }
  func.func @transform_0(%arg0: i32, %arg1: i32) -> (i32, i32) {
    %c0_i32 = arith.constant 0 : i32
    %c0_i32_0 = arith.constant 0 : i32
    return %arg0, %c0_i32 : i32, i32
  }
  func.func @transform_1(%arg0: i32, %arg1: i32) -> (i32, i32) {
    %c0_i32 = arith.constant 0 : i32
    %c0_i32_0 = arith.constant 0 : i32
    return %c0_i32, %arg1 : i32, i32
  }
  func.func @transform_2(%arg0: i32, %arg1: i32) -> (i32, i32) {
    %c0_i32 = arith.constant 0 : i32
    %c0_i32_0 = arith.constant 0 : i32
    return %c0_i32, %arg1 : i32, i32
  }
  func.func @transform_3(%arg0: i32, %arg1: i32) -> (i32, i32) {
    %c0_i32 = arith.constant 0 : i32
    return %arg0, %arg1 : i32, i32
  }
}

module attributes {stable_mosaic.version = 11 : i64} {
  func.func @_linear_kernel(%arg0: i32, %arg1: i32, %arg2: memref<16x64xf32, #tpu.memory_space<vmem>>, %arg3: memref<64x128xbf16, #tpu.memory_space<vmem>>, %arg4: memref<1x128xf32, #tpu.memory_space<vmem>>, %arg5: memref<16x128xf32, #tpu.memory_space<vmem>>) attributes {dimension_semantics = [#tpu.dimension_semantics<parallel>, #tpu.dimension_semantics<parallel>], iteration_bounds = array<i64: 1, 1>, scalar_prefetch = 0 : i64, scratch_operands = 0 : i64, tpu.core_type = #tpu.core_type<tc>, window_params = [{transform_indices = @transform_0, window_bounds = array<i64: 16, 64>}, {transform_indices = @transform_1, window_bounds = array<i64: 64, 128>}, {transform_indices = @transform_2, window_bounds = array<i64: 1, 128>}, {transform_indices = @transform_3, window_bounds = array<i64: 16, 128>}]} {
    %c0 = arith.constant 0 : index
    %c0_0 = arith.constant 0 : index
    %0 = vector.load %arg2[%c0, %c0_0] : memref<16x64xf32, #tpu.memory_space<vmem>>, vector<16x64xf32>
    %1 = arith.truncf %0 : vector<16x64xf32> to vector<16x64xbf16>
    %c0_1 = arith.constant 0 : index
    %c0_2 = arith.constant 0 : index
    %2 = vector.load %arg3[%c0_1, %c0_2] : memref<64x128xbf16, #tpu.memory_space<vmem>>, vector<64x128xbf16>
    %cst = arith.constant dense<0.000000e+00> : vector<16x128xf32>
    %3 = tpu.matmul %1, %2, %cst {dimension_numbers = #tpu.dot_dimension_numbers<[1], [0], [0], [1], [0, 0, 1, 1], [], []>} : vector<16x64xbf16>, vector<64x128xbf16>, vector<16x128xf32> -> vector<16x128xf32>
    %c0_3 = arith.constant 0 : index
    %c0_4 = arith.constant 0 : index
    %4 = vector.load %arg4[%c0_3, %c0_4] : memref<1x128xf32, #tpu.memory_space<vmem>>, vector<1x128xf32>
    %5 = vector.broadcast %4 : vector<1x128xf32> to vector<16x128xf32>
    %6 = arith.addf %3, %5 : vector<16x128xf32>
    %c0_5 = arith.constant 0 : index
    %c0_6 = arith.constant 0 : index
    %7 = vector.load %arg5[%c0_5, %c0_6] : memref<16x128xf32, #tpu.memory_space<vmem>>, vector<16x128xf32>
    tpu.vector_store %arg5[%c0_5, %c0_6], %6 {strides = array<i32>} : memref<16x128xf32, #tpu.memory_space<vmem>>, vector<16x128xf32>,
    return
  }
  func.func @transform_0(%arg0: i32, %arg1: i32) -> (i32, i32) {
    %c0_i32 = arith.constant 0 : i32
    %c0_i32_0 = arith.constant 0 : i32
    return %arg0, %c0_i32 : i32, i32
  }
  func.func @transform_1(%arg0: i32, %arg1: i32) -> (i32, i32) {
    %c0_i32 = arith.constant 0 : i32
    %c0_i32_0 = arith.constant 0 : i32
    return %c0_i32, %arg1 : i32, i32
  }
  func.func @transform_2(%arg0: i32, %arg1: i32) -> (i32, i32) {
    %c0_i32 = arith.constant 0 : i32
    %c0_i32_0 = arith.constant 0 : i32
    return %c0_i32, %arg1 : i32, i32
  }
  func.func @transform_3(%arg0: i32, %arg1: i32) -> (i32, i32) {
    %c0_i32 = arith.constant 0 : i32
    return %arg0, %arg1 : i32, i32
  }
}

module attributes {stable_mosaic.version = 11 : i64} {
  func.func @_pointer_kernel(%arg0: i32, %arg1: memref<2x8x128xf32, #tpu.memory_space<vmem>>, %arg2: memref<2x8x8xf32, #tpu.memory_space<vmem>>) attributes {dimension_semantics = [#tpu.dimension_semantics<parallel>], iteration_bounds = array<i64: 1>, scalar_prefetch = 0 : i64, scratch_operands = 0 : i64, tpu.core_type = #tpu.core_type<tc>, window_params = [{transform_indices = @transform_0, window_bounds = array<i64: 2, 8, 128>}, {transform_indices = @transform_1, window_bounds = array<i64: 2, 8, 8>}]} {
    %c0 = arith.constant 0 : index
    %c0_0 = arith.constant 0 : index
    %c0_1 = arith.constant 0 : index
    %0 = vector.load %arg1[%c0, %c0_0, %c0_1] : memref<2x8x128xf32, #tpu.memory_space<vmem>>, vector<2x8x128xf32>
    %1 = vector.extract_strided_slice %0 {offsets = [0, 0, 0], sizes = [2, 8, 64], strides = [1, 1, 1]} : vector<2x8x128xf32> to vector<2x8x64xf32>
    %2 = arith.truncf %1 : vector<2x8x64xf32> to vector<2x8x64xbf16>
    %3 = vector.extract_strided_slice %0 {offsets = [0, 0, 64], sizes = [2, 8, 64], strides = [1, 1, 1]} : vector<2x8x128xf32> to vector<2x8x64xf32>
    %4 = arith.truncf %3 : vector<2x8x64xf32> to vector<2x8x64xbf16>
    "tpu.trace_start"() <{level = 10 : i32, message = "bqd,bkd->bqk"}> : () -> ()
    %cst = arith.constant dense<0.000000e+00> : vector<2x8x8xf32>
    %5 = tpu.matmul %2, %4, %cst {dimension_numbers = #tpu.dot_dimension_numbers<[2], [2], [1], [1], [0, 0, 0, 1, 1, 1], [0], [0]>} : vector<2x8x64xbf16>, vector<2x8x64xbf16>, vector<2x8x8xf32> -> vector<2x8x8xf32>
    "tpu.trace_stop"() : () -> ()
    %cst_2 = arith.constant 1.250000e-01 : f32
    %6 = vector.broadcast %cst_2 : f32 to vector<2x8x8xf32>
    %7 = arith.mulf %5, %6 : vector<2x8x8xf32>
    %8 = tpu.iota {dimensions = array<i32: 1>} : vector<1x8x8xi32>
    %9 = tpu.iota {dimensions = array<i32: 2>} : vector<1x8x8xi32>
    %10 = arith.cmpi sgt, %9, %8 : vector<1x8x8xi32>
    %cst_3 = arith.constant 0xFF800000 : f32
    %11 = vector.shape_cast %10 : vector<1x8x8xi1> to vector<1x8x8xi1>
    %12 = vector.broadcast %11 : vector<1x8x8xi1> to vector<2x8x8xi1>
    %13 = vector.broadcast %cst_3 : f32 to vector<2x8x8xf32>
    %14 = arith.select %12, %13, %7 : vector<2x8x8xi1>, vector<2x8x8xf32>
    %cst_4 = arith.constant dense<0xFF800000> : vector<2x8xf32>
    %15 = vector.multi_reduction <maximumf>, %14, %cst_4 [2] : vector<2x8x8xf32> to vector<2x8xf32>
    %16 = vector.shape_cast %15 : vector<2x8xf32> to vector<2x8x1xf32>
    %17 = vector.broadcast %16 : vector<2x8x1xf32> to vector<2x8x8xf32>
    %18 = arith.subf %14, %17 : vector<2x8x8xf32>
    %19 = math.exp %18 : vector<2x8x8xf32>
    %cst_5 = arith.constant dense<0.000000e+00> : vector<2x8xf32>
    %20 = vector.multi_reduction <add>, %19, %cst_5 [2] : vector<2x8x8xf32> to vector<2x8xf32>
    %21 = vector.shape_cast %20 : vector<2x8xf32> to vector<2x8x1xf32>
    %22 = tpu.reciprocal %21 {approx = true} : vector<2x8x1xf32> -> vector<2x8x1xf32>
    %23 = vector.broadcast %22 : vector<2x8x1xf32> to vector<2x8x8xf32>
    %24 = arith.mulf %19, %23 : vector<2x8x8xf32>
    %c0_6 = arith.constant 0 : index
    %c0_7 = arith.constant 0 : index
    %c0_8 = arith.constant 0 : index
    %25 = vector.load %arg2[%c0_6, %c0_7, %c0_8] : memref<2x8x8xf32, #tpu.memory_space<vmem>>, vector<2x8x8xf32>
    tpu.vector_store %arg2[%c0_6, %c0_7, %c0_8], %24 {strides = array<i32>} : memref<2x8x8xf32, #tpu.memory_space<vmem>>, vector<2x8x8xf32>,
    return
  }
  func.func @transform_0(%arg0: i32) -> (i32, i32, i32) {
    %c0_i32 = arith.constant 0 : i32
    %c0_i32_0 = arith.constant 0 : i32
    %c0_i32_1 = arith.constant 0 : i32
    return %arg0, %c0_i32, %c0_i32_0 : i32, i32, i32
  }
  func.func @transform_1(%arg0: i32) -> (i32, i32, i32) {
    %c0_i32 = arith.constant 0 : i32
    %c0_i32_0 = arith.constant 0 : i32
    %c0_i32_1 = arith.constant 0 : i32
    return %arg0, %c0_i32, %c0_i32_0 : i32, i32, i32
  }
}

module attributes {stable_mosaic.version = 11 : i64} {
  func.func @_lstm_chunk_kernel(%arg0: i32, %arg1: memref<4x2x64xf32, #tpu.memory_space<vmem>>, %arg2: memref<64x256xbf16, #tpu.memory_space<vmem>>, %arg3: memref<64x256xbf16, #tpu.memory_space<vmem>>, %arg4: memref<1x256xf32, #tpu.memory_space<vmem>>, %arg5: memref<2x64xf32, #tpu.memory_space<vmem>>, %arg6: memref<2x64xf32, #tpu.memory_space<vmem>>, %arg7: memref<4x2x64xf32, #tpu.memory_space<vmem>>, %arg8: memref<2x64xf32, #tpu.memory_space<vmem>>, %arg9: memref<2x64xf32, #tpu.memory_space<vmem>>, %arg10: memref<2x64xf32, #tpu.memory_space<vmem>>, %arg11: memref<2x64xf32, #tpu.memory_space<vmem>>, %arg12: memref<4x2x256xf32, #tpu.memory_space<vmem>>) attributes {dimension_semantics = [#tpu.dimension_semantics<arbitrary>], iteration_bounds = array<i64: 2>, scalar_prefetch = 0 : i64, scratch_operands = 3 : i64, tpu.core_type = #tpu.core_type<tc>, window_params = [{transform_indices = @transform_0, window_bounds = array<i64: 4, 2, 64>}, {pipeline_mode = #tpu.pipeline_mode<synchronous>, transform_indices = @transform_1, window_bounds = array<i64: 64, 256>}, {pipeline_mode = #tpu.pipeline_mode<synchronous>, transform_indices = @transform_2, window_bounds = array<i64: 64, 256>}, {pipeline_mode = #tpu.pipeline_mode<synchronous>, transform_indices = @transform_3, window_bounds = array<i64: 1, 256>}, {pipeline_mode = #tpu.pipeline_mode<synchronous>, transform_indices = @transform_4, window_bounds = array<i64: 2, 64>}, {pipeline_mode = #tpu.pipeline_mode<synchronous>, transform_indices = @transform_5, window_bounds = array<i64: 2, 64>}, {transform_indices = @transform_6, window_bounds = array<i64: 4, 2, 64>}, {pipeline_mode = #tpu.pipeline_mode<synchronous>, transform_indices = @transform_7, window_bounds = array<i64: 2, 64>}, {pipeline_mode = #tpu.pipeline_mode<synchronous>, transform_indices = @transform_8, window_bounds = array<i64: 2, 64>}]} {
    %c0_i32 = arith.constant 0 : i32
    %0 = arith.cmpi eq, %arg0, %c0_i32 : i32
    %1 = arith.extui %0 : i1 to i32
    %c0_i32_0 = arith.constant 0 : i32
    %2 = arith.cmpi ne, %1, %c0_i32_0 : i32
    scf.if %2 {
      %c0_55 = arith.constant 0 : index
      %c0_56 = arith.constant 0 : index
      %161 = vector.load %arg5[%c0_55, %c0_56] : memref<2x64xf32, #tpu.memory_space<vmem>>, vector<2x64xf32>
      %c0_57 = arith.constant 0 : index
      %c0_58 = arith.constant 0 : index
      %162 = vector.load %arg10[%c0_57, %c0_58] : memref<2x64xf32, #tpu.memory_space<vmem>>, vector<2x64xf32>
      tpu.vector_store %arg10[%c0_57, %c0_58], %161 {strides = array<i32>} : memref<2x64xf32, #tpu.memory_space<vmem>>, vector<2x64xf32>,
      %c0_59 = arith.constant 0 : index
      %c0_60 = arith.constant 0 : index
      %163 = vector.load %arg6[%c0_59, %c0_60] : memref<2x64xf32, #tpu.memory_space<vmem>>, vector<2x64xf32>
      %c0_61 = arith.constant 0 : index
      %c0_62 = arith.constant 0 : index
      %164 = vector.load %arg11[%c0_61, %c0_62] : memref<2x64xf32, #tpu.memory_space<vmem>>, vector<2x64xf32>
      tpu.vector_store %arg11[%c0_61, %c0_62], %163 {strides = array<i32>} : memref<2x64xf32, #tpu.memory_space<vmem>>, vector<2x64xf32>,
    } else {
    }
    %c0 = arith.constant 0 : index
    %c0_1 = arith.constant 0 : index
    %c0_2 = arith.constant 0 : index
    %3 = vector.load %arg1[%c0, %c0_1, %c0_2] : memref<4x2x64xf32, #tpu.memory_space<vmem>>, vector<4x2x64xf32>
    %4 = vector.shape_cast %3 : vector<4x2x64xf32> to vector<8x64xf32>
    %5 = arith.truncf %4 : vector<8x64xf32> to vector<8x64xbf16>
    %c0_3 = arith.constant 0 : index
    %c0_4 = arith.constant 0 : index
    %6 = vector.load %arg2[%c0_3, %c0_4] : memref<64x256xbf16, #tpu.memory_space<vmem>>, vector<64x256xbf16>
    %cst = arith.constant dense<0.000000e+00> : vector<8x256xf32>
    %7 = tpu.matmul %5, %6, %cst {dimension_numbers = #tpu.dot_dimension_numbers<[1], [0], [0], [1], [0, 0, 1, 1], [], []>} : vector<8x64xbf16>, vector<64x256xbf16>, vector<8x256xf32> -> vector<8x256xf32>
    %c0_5 = arith.constant 0 : index
    %c0_6 = arith.constant 0 : index
    %8 = vector.load %arg4[%c0_5, %c0_6] : memref<1x256xf32, #tpu.memory_space<vmem>>, vector<1x256xf32>
    %9 = vector.broadcast %8 : vector<1x256xf32> to vector<8x256xf32>
    %10 = arith.addf %7, %9 : vector<8x256xf32>
    %11 = vector.shape_cast %10 : vector<8x256xf32> to vector<4x2x256xf32>
    %c0_7 = arith.constant 0 : index
    %c0_8 = arith.constant 0 : index
    %c0_9 = arith.constant 0 : index
    %12 = vector.load %arg12[%c0_7, %c0_8, %c0_9] : memref<4x2x256xf32, #tpu.memory_space<vmem>>, vector<4x2x256xf32>
    tpu.vector_store %arg12[%c0_7, %c0_8, %c0_9], %11 {strides = array<i32>} : memref<4x2x256xf32, #tpu.memory_space<vmem>>, vector<4x2x256xf32>,
    %c0_10 = arith.constant 0 : index
    %c0_11 = arith.constant 0 : index
    %13 = vector.load %arg3[%c0_10, %c0_11] : memref<64x256xbf16, #tpu.memory_space<vmem>>, vector<64x256xbf16>
    %c0_12 = arith.constant 0 : index
    %c0_13 = arith.constant 0 : index
    %14 = vector.load %arg10[%c0_12, %c0_13] : memref<2x64xf32, #tpu.memory_space<vmem>>, vector<2x64xf32>
    %c0_14 = arith.constant 0 : index
    %c0_15 = arith.constant 0 : index
    %15 = vector.load %arg11[%c0_14, %c0_15] : memref<2x64xf32, #tpu.memory_space<vmem>>, vector<2x64xf32>
    %c0_i32_16 = arith.constant 0 : i32
    %16 = arith.index_cast %c0_i32_16 : i32 to index
    %c0_17 = arith.constant 0 : index
    %c0_18 = arith.constant 0 : index
    %17 = vector.load %arg12[%16, %c0_17, %c0_18] : memref<4x2x256xf32, #tpu.memory_space<vmem>>, vector<1x2x256xf32>
    %18 = vector.shape_cast %17 : vector<1x2x256xf32> to vector<2x256xf32>
    %19 = arith.truncf %14 : vector<2x64xf32> to vector<2x64xbf16>
    %cst_19 = arith.constant dense<0.000000e+00> : vector<2x256xf32>
    %20 = tpu.matmul %19, %13, %cst_19 {dimension_numbers = #tpu.dot_dimension_numbers<[1], [0], [0], [1], [0, 0, 1, 1], [], []>} : vector<2x64xbf16>, vector<64x256xbf16>, vector<2x256xf32> -> vector<2x256xf32>
    %21 = arith.addf %18, %20 : vector<2x256xf32>
    %22 = vector.extract_strided_slice %21 {offsets = [0, 0], sizes = [2, 64], strides = [1, 1]} : vector<2x256xf32> to vector<2x64xf32>
    %23 = arith.negf %22 : vector<2x64xf32>
    %24 = math.exp %23 : vector<2x64xf32>
    %cst_20 = arith.constant 1.000000e+00 : f32
    %25 = vector.broadcast %cst_20 : f32 to vector<2x64xf32>
    %26 = arith.addf %25, %24 : vector<2x64xf32>
    %27 = arith.divf %25, %26 : vector<2x64xf32>
    %28 = vector.extract_strided_slice %21 {offsets = [0, 64], sizes = [2, 64], strides = [1, 1]} : vector<2x256xf32> to vector<2x64xf32>
    %29 = arith.negf %28 : vector<2x64xf32>
    %30 = math.exp %29 : vector<2x64xf32>
    %cst_21 = arith.constant 1.000000e+00 : f32
    %31 = vector.broadcast %cst_21 : f32 to vector<2x64xf32>
    %32 = arith.addf %31, %30 : vector<2x64xf32>
    %33 = arith.divf %31, %32 : vector<2x64xf32>
    %34 = vector.extract_strided_slice %21 {offsets = [0, 128], sizes = [2, 64], strides = [1, 1]} : vector<2x256xf32> to vector<2x64xf32>
    %35 = math.tanh %34 : vector<2x64xf32>
    %36 = vector.extract_strided_slice %21 {offsets = [0, 192], sizes = [2, 64], strides = [1, 1]} : vector<2x256xf32> to vector<2x64xf32>
    %37 = arith.negf %36 : vector<2x64xf32>
    %38 = math.exp %37 : vector<2x64xf32>
    %cst_22 = arith.constant 1.000000e+00 : f32
    %39 = vector.broadcast %cst_22 : f32 to vector<2x64xf32>
    %40 = arith.addf %39, %38 : vector<2x64xf32>
    %41 = arith.divf %39, %40 : vector<2x64xf32>
    %42 = arith.mulf %33, %15 : vector<2x64xf32>
    %43 = arith.mulf %27, %35 : vector<2x64xf32>
    %44 = arith.addf %42, %43 : vector<2x64xf32>
    %45 = math.tanh %44 : vector<2x64xf32>
    %46 = arith.mulf %41, %45 : vector<2x64xf32>
    %47 = arith.index_cast %c0_i32_16 : i32 to index
    %c0_23 = arith.constant 0 : index
    %c0_24 = arith.constant 0 : index
    %48 = vector.load %arg7[%47, %c0_23, %c0_24] : memref<4x2x64xf32, #tpu.memory_space<vmem>>, vector<1x2x64xf32>
    %49 = vector.shape_cast %48 : vector<1x2x64xf32> to vector<2x64xf32>
    %50 = vector.shape_cast %46 : vector<2x64xf32> to vector<1x2x64xf32>
    tpu.vector_store %arg7[%47, %c0_23, %c0_24], %50 {strides = array<i32>} : memref<4x2x64xf32, #tpu.memory_space<vmem>>, vector<1x2x64xf32>,
    %c1_i32 = arith.constant 1 : i32
    %51 = arith.index_cast %c1_i32 : i32 to index
    %c0_25 = arith.constant 0 : index
    %c0_26 = arith.constant 0 : index
    %52 = vector.load %arg12[%51, %c0_25, %c0_26] : memref<4x2x256xf32, #tpu.memory_space<vmem>>, vector<1x2x256xf32>
    %53 = vector.shape_cast %52 : vector<1x2x256xf32> to vector<2x256xf32>
    %54 = arith.truncf %46 : vector<2x64xf32> to vector<2x64xbf16>
    %cst_27 = arith.constant dense<0.000000e+00> : vector<2x256xf32>
    %55 = tpu.matmul %54, %13, %cst_27 {dimension_numbers = #tpu.dot_dimension_numbers<[1], [0], [0], [1], [0, 0, 1, 1], [], []>} : vector<2x64xbf16>, vector<64x256xbf16>, vector<2x256xf32> -> vector<2x256xf32>
    %56 = arith.addf %53, %55 : vector<2x256xf32>
    %57 = vector.extract_strided_slice %56 {offsets = [0, 0], sizes = [2, 64], strides = [1, 1]} : vector<2x256xf32> to vector<2x64xf32>
    %58 = arith.negf %57 : vector<2x64xf32>
    %59 = math.exp %58 : vector<2x64xf32>
    %cst_28 = arith.constant 1.000000e+00 : f32
    %60 = vector.broadcast %cst_28 : f32 to vector<2x64xf32>
    %61 = arith.addf %60, %59 : vector<2x64xf32>
    %62 = arith.divf %60, %61 : vector<2x64xf32>
    %63 = vector.extract_strided_slice %56 {offsets = [0, 64], sizes = [2, 64], strides = [1, 1]} : vector<2x256xf32> to vector<2x64xf32>
    %64 = arith.negf %63 : vector<2x64xf32>
    %65 = math.exp %64 : vector<2x64xf32>
    %cst_29 = arith.constant 1.000000e+00 : f32
    %66 = vector.broadcast %cst_29 : f32 to vector<2x64xf32>
    %67 = arith.addf %66, %65 : vector<2x64xf32>
    %68 = arith.divf %66, %67 : vector<2x64xf32>
    %69 = vector.extract_strided_slice %56 {offsets = [0, 128], sizes = [2, 64], strides = [1, 1]} : vector<2x256xf32> to vector<2x64xf32>
    %70 = math.tanh %69 : vector<2x64xf32>
    %71 = vector.extract_strided_slice %56 {offsets = [0, 192], sizes = [2, 64], strides = [1, 1]} : vector<2x256xf32> to vector<2x64xf32>
    %72 = arith.negf %71 : vector<2x64xf32>
    %73 = math.exp %72 : vector<2x64xf32>
    %cst_30 = arith.constant 1.000000e+00 : f32
    %74 = vector.broadcast %cst_30 : f32 to vector<2x64xf32>
    %75 = arith.addf %74, %73 : vector<2x64xf32>
    %76 = arith.divf %74, %75 : vector<2x64xf32>
    %77 = arith.mulf %68, %44 : vector<2x64xf32>
    %78 = arith.mulf %62, %70 : vector<2x64xf32>
    %79 = arith.addf %77, %78 : vector<2x64xf32>
    %80 = math.tanh %79 : vector<2x64xf32>
    %81 = arith.mulf %76, %80 : vector<2x64xf32>
    %82 = arith.index_cast %c1_i32 : i32 to index
    %c0_31 = arith.constant 0 : index
    %c0_32 = arith.constant 0 : index
    %83 = vector.load %arg7[%82, %c0_31, %c0_32] : memref<4x2x64xf32, #tpu.memory_space<vmem>>, vector<1x2x64xf32>
    %84 = vector.shape_cast %83 : vector<1x2x64xf32> to vector<2x64xf32>
    %85 = vector.shape_cast %81 : vector<2x64xf32> to vector<1x2x64xf32>
    tpu.vector_store %arg7[%82, %c0_31, %c0_32], %85 {strides = array<i32>} : memref<4x2x64xf32, #tpu.memory_space<vmem>>, vector<1x2x64xf32>,
    %c2_i32 = arith.constant 2 : i32
    %86 = arith.index_cast %c2_i32 : i32 to index
    %c0_33 = arith.constant 0 : index
    %c0_34 = arith.constant 0 : index
    %87 = vector.load %arg12[%86, %c0_33, %c0_34] : memref<4x2x256xf32, #tpu.memory_space<vmem>>, vector<1x2x256xf32>
    %88 = vector.shape_cast %87 : vector<1x2x256xf32> to vector<2x256xf32>
    %89 = arith.truncf %81 : vector<2x64xf32> to vector<2x64xbf16>
    %cst_35 = arith.constant dense<0.000000e+00> : vector<2x256xf32>
    %90 = tpu.matmul %89, %13, %cst_35 {dimension_numbers = #tpu.dot_dimension_numbers<[1], [0], [0], [1], [0, 0, 1, 1], [], []>} : vector<2x64xbf16>, vector<64x256xbf16>, vector<2x256xf32> -> vector<2x256xf32>
    %91 = arith.addf %88, %90 : vector<2x256xf32>
    %92 = vector.extract_strided_slice %91 {offsets = [0, 0], sizes = [2, 64], strides = [1, 1]} : vector<2x256xf32> to vector<2x64xf32>
    %93 = arith.negf %92 : vector<2x64xf32>
    %94 = math.exp %93 : vector<2x64xf32>
    %cst_36 = arith.constant 1.000000e+00 : f32
    %95 = vector.broadcast %cst_36 : f32 to vector<2x64xf32>
    %96 = arith.addf %95, %94 : vector<2x64xf32>
    %97 = arith.divf %95, %96 : vector<2x64xf32>
    %98 = vector.extract_strided_slice %91 {offsets = [0, 64], sizes = [2, 64], strides = [1, 1]} : vector<2x256xf32> to vector<2x64xf32>
    %99 = arith.negf %98 : vector<2x64xf32>
    %100 = math.exp %99 : vector<2x64xf32>
    %cst_37 = arith.constant 1.000000e+00 : f32
    %101 = vector.broadcast %cst_37 : f32 to vector<2x64xf32>
    %102 = arith.addf %101, %100 : vector<2x64xf32>
    %103 = arith.divf %101, %102 : vector<2x64xf32>
    %104 = vector.extract_strided_slice %91 {offsets = [0, 128], sizes = [2, 64], strides = [1, 1]} : vector<2x256xf32> to vector<2x64xf32>
    %105 = math.tanh %104 : vector<2x64xf32>
    %106 = vector.extract_strided_slice %91 {offsets = [0, 192], sizes = [2, 64], strides = [1, 1]} : vector<2x256xf32> to vector<2x64xf32>
    %107 = arith.negf %106 : vector<2x64xf32>
    %108 = math.exp %107 : vector<2x64xf32>
    %cst_38 = arith.constant 1.000000e+00 : f32
    %109 = vector.broadcast %cst_38 : f32 to vector<2x64xf32>
    %110 = arith.addf %109, %108 : vector<2x64xf32>
    %111 = arith.divf %109, %110 : vector<2x64xf32>
    %112 = arith.mulf %103, %79 : vector<2x64xf32>
    %113 = arith.mulf %97, %105 : vector<2x64xf32>
    %114 = arith.addf %112, %113 : vector<2x64xf32>
    %115 = math.tanh %114 : vector<2x64xf32>
    %116 = arith.mulf %111, %115 : vector<2x64xf32>
    %117 = arith.index_cast %c2_i32 : i32 to index
    %c0_39 = arith.constant 0 : index
    %c0_40 = arith.constant 0 : index
    %118 = vector.load %arg7[%117, %c0_39, %c0_40] : memref<4x2x64xf32, #tpu.memory_space<vmem>>, vector<1x2x64xf32>
    %119 = vector.shape_cast %118 : vector<1x2x64xf32> to vector<2x64xf32>
    %120 = vector.shape_cast %116 : vector<2x64xf32> to vector<1x2x64xf32>
    tpu.vector_store %arg7[%117, %c0_39, %c0_40], %120 {strides = array<i32>} : memref<4x2x64xf32, #tpu.memory_space<vmem>>, vector<1x2x64xf32>,
    %c3_i32 = arith.constant 3 : i32
    %121 = arith.index_cast %c3_i32 : i32 to index
    %c0_41 = arith.constant 0 : index
    %c0_42 = arith.constant 0 : index
    %122 = vector.load %arg12[%121, %c0_41, %c0_42] : memref<4x2x256xf32, #tpu.memory_space<vmem>>, vector<1x2x256xf32>
    %123 = vector.shape_cast %122 : vector<1x2x256xf32> to vector<2x256xf32>
    %124 = arith.truncf %116 : vector<2x64xf32> to vector<2x64xbf16>
    %cst_43 = arith.constant dense<0.000000e+00> : vector<2x256xf32>
    %125 = tpu.matmul %124, %13, %cst_43 {dimension_numbers = #tpu.dot_dimension_numbers<[1], [0], [0], [1], [0, 0, 1, 1], [], []>} : vector<2x64xbf16>, vector<64x256xbf16>, vector<2x256xf32> -> vector<2x256xf32>
    %126 = arith.addf %123, %125 : vector<2x256xf32>
    %127 = vector.extract_strided_slice %126 {offsets = [0, 0], sizes = [2, 64], strides = [1, 1]} : vector<2x256xf32> to vector<2x64xf32>
    %128 = arith.negf %127 : vector<2x64xf32>
    %129 = math.exp %128 : vector<2x64xf32>
    %cst_44 = arith.constant 1.000000e+00 : f32
    %130 = vector.broadcast %cst_44 : f32 to vector<2x64xf32>
    %131 = arith.addf %130, %129 : vector<2x64xf32>
    %132 = arith.divf %130, %131 : vector<2x64xf32>
    %133 = vector.extract_strided_slice %126 {offsets = [0, 64], sizes = [2, 64], strides = [1, 1]} : vector<2x256xf32> to vector<2x64xf32>
    %134 = arith.negf %133 : vector<2x64xf32>
    %135 = math.exp %134 : vector<2x64xf32>
    %cst_45 = arith.constant 1.000000e+00 : f32
    %136 = vector.broadcast %cst_45 : f32 to vector<2x64xf32>
    %137 = arith.addf %136, %135 : vector<2x64xf32>
    %138 = arith.divf %136, %137 : vector<2x64xf32>
    %139 = vector.extract_strided_slice %126 {offsets = [0, 128], sizes = [2, 64], strides = [1, 1]} : vector<2x256xf32> to vector<2x64xf32>
    %140 = math.tanh %139 : vector<2x64xf32>
    %141 = vector.extract_strided_slice %126 {offsets = [0, 192], sizes = [2, 64], strides = [1, 1]} : vector<2x256xf32> to vector<2x64xf32>
    %142 = arith.negf %141 : vector<2x64xf32>
    %143 = math.exp %142 : vector<2x64xf32>
    %cst_46 = arith.constant 1.000000e+00 : f32
    %144 = vector.broadcast %cst_46 : f32 to vector<2x64xf32>
    %145 = arith.addf %144, %143 : vector<2x64xf32>
    %146 = arith.divf %144, %145 : vector<2x64xf32>
    %147 = arith.mulf %138, %114 : vector<2x64xf32>
    %148 = arith.mulf %132, %140 : vector<2x64xf32>
    %149 = arith.addf %147, %148 : vector<2x64xf32>
    %150 = math.tanh %149 : vector<2x64xf32>
    %151 = arith.mulf %146, %150 : vector<2x64xf32>
    %152 = arith.index_cast %c3_i32 : i32 to index
    %c0_47 = arith.constant 0 : index
    %c0_48 = arith.constant 0 : index
    %153 = vector.load %arg7[%152, %c0_47, %c0_48] : memref<4x2x64xf32, #tpu.memory_space<vmem>>, vector<1x2x64xf32>
    %154 = vector.shape_cast %153 : vector<1x2x64xf32> to vector<2x64xf32>
    %155 = vector.shape_cast %151 : vector<2x64xf32> to vector<1x2x64xf32>
    tpu.vector_store %arg7[%152, %c0_47, %c0_48], %155 {strides = array<i32>} : memref<4x2x64xf32, #tpu.memory_space<vmem>>, vector<1x2x64xf32>,
    %c4_i32 = arith.constant 4 : i32
    %c0_49 = arith.constant 0 : index
    %c0_50 = arith.constant 0 : index
    %156 = vector.load %arg10[%c0_49, %c0_50] : memref<2x64xf32, #tpu.memory_space<vmem>>, vector<2x64xf32>
    tpu.vector_store %arg10[%c0_49, %c0_50], %151 {strides = array<i32>} : memref<2x64xf32, #tpu.memory_space<vmem>>, vector<2x64xf32>,
    %c0_51 = arith.constant 0 : index
    %c0_52 = arith.constant 0 : index
    %157 = vector.load %arg11[%c0_51, %c0_52] : memref<2x64xf32, #tpu.memory_space<vmem>>, vector<2x64xf32>
    tpu.vector_store %arg11[%c0_51, %c0_52], %149 {strides = array<i32>} : memref<2x64xf32, #tpu.memory_space<vmem>>, vector<2x64xf32>,
    %c1_i32_53 = arith.constant 1 : i32
    %158 = arith.cmpi eq, %arg0, %c1_i32_53 : i32
    %159 = arith.extui %158 : i1 to i32
    %c0_i32_54 = arith.constant 0 : i32
    %160 = arith.cmpi ne, %159, %c0_i32_54 : i32
    scf.if %160 {
      %c0_55 = arith.constant 0 : index
      %c0_56 = arith.constant 0 : index
      %161 = vector.load %arg8[%c0_55, %c0_56] : memref<2x64xf32, #tpu.memory_space<vmem>>, vector<2x64xf32>
      tpu.vector_store %arg8[%c0_55, %c0_56], %151 {strides = array<i32>} : memref<2x64xf32, #tpu.memory_space<vmem>>, vector<2x64xf32>,
      %c0_57 = arith.constant 0 : index
      %c0_58 = arith.constant 0 : index
      %162 = vector.load %arg9[%c0_57, %c0_58] : memref<2x64xf32, #tpu.memory_space<vmem>>, vector<2x64xf32>
      tpu.vector_store %arg9[%c0_57, %c0_58], %149 {strides = array<i32>} : memref<2x64xf32, #tpu.memory_space<vmem>>, vector<2x64xf32>,
    } else {
    }
    return
  }
  func.func @transform_0(%arg0: i32) -> (i32, i32, i32) {
    %c0_i32 = arith.constant 0 : i32
    %c0_i32_0 = arith.constant 0 : i32
    %c0_i32_1 = arith.constant 0 : i32
    return %arg0, %c0_i32, %c0_i32_0 : i32, i32, i32
  }
  func.func @transform_1(%arg0: i32) -> (i32, i32) {
    %c0_i32 = arith.constant 0 : i32
    %c0_i32_0 = arith.constant 0 : i32
    %c0_i32_1 = arith.constant 0 : i32
    return %c0_i32, %c0_i32_0 : i32, i32
  }
  func.func @transform_2(%arg0: i32) -> (i32, i32) {
    %c0_i32 = arith.constant 0 : i32
    %c0_i32_0 = arith.constant 0 : i32
    %c0_i32_1 = arith.constant 0 : i32
    return %c0_i32, %c0_i32_0 : i32, i32
  }
  func.func @transform_3(%arg0: i32) -> (i32, i32) {
    %c0_i32 = arith.constant 0 : i32
    %c0_i32_0 = arith.constant 0 : i32
    %c0_i32_1 = arith.constant 0 : i32
    return %c0_i32, %c0_i32_0 : i32, i32
  }
  func.func @transform_4(%arg0: i32) -> (i32, i32) {
    %c0_i32 = arith.constant 0 : i32
    %c0_i32_0 = arith.constant 0 : i32
    %c0_i32_1 = arith.constant 0 : i32
    return %c0_i32, %c0_i32_0 : i32, i32
  }
  func.func @transform_5(%arg0: i32) -> (i32, i32) {
    %c0_i32 = arith.constant 0 : i32
    %c0_i32_0 = arith.constant 0 : i32
    %c0_i32_1 = arith.constant 0 : i32
    return %c0_i32, %c0_i32_0 : i32, i32
  }
  func.func @transform_6(%arg0: i32) -> (i32, i32, i32) {
    %c0_i32 = arith.constant 0 : i32
    %c0_i32_0 = arith.constant 0 : i32
    %c0_i32_1 = arith.constant 0 : i32
    return %arg0, %c0_i32, %c0_i32_0 : i32, i32, i32
  }
  func.func @transform_7(%arg0: i32) -> (i32, i32) {
    %c0_i32 = arith.constant 0 : i32
    %c0_i32_0 = arith.constant 0 : i32
    %c0_i32_1 = arith.constant 0 : i32
    return %c0_i32, %c0_i32_0 : i32, i32
  }
  func.func @transform_8(%arg0: i32) -> (i32, i32) {
    %c0_i32 = arith.constant 0 : i32
    %c0_i32_0 = arith.constant 0 : i32
    %c0_i32_1 = arith.constant 0 : i32
    return %c0_i32, %c0_i32_0 : i32, i32
  }
}

</mosaic_0001>

<llo_original>
// kernel: dp_rnn_forward.8
$region0: #{dp_rnn_forward.8}
  #allocation0 [shape = 'u32[]', space=smem, size = 0x4, offset = 0x4, fixed_abs, tag = 'smem constant byte address 0x4 - core index']
  #allocation1 [shape = 'u32[144,128]{1,0:T(1,128)}', space=vmem, size = 0x12000, scoped, tag = 'internal scratch']
  %s0 = inlined_call_operand.vmem [shape: f32[16,64], index: 0, kind: input, shape index: {}]
  %s1 = inlined_call_operand.vmem [shape: bf16[64,128], index: 1, kind: input, shape index: {}]
  %s2 = inlined_call_operand.vmem [shape: f32[1,128], index: 2, kind: input, shape index: {}]
  %s3 = inlined_call_operand.vmem [shape: f32[16,128], index: 3, kind: output, shape index: {}]
  %s4 = sld [smem:[#allocation0]]
  $region22: #{dp_rnn_forward.8} parent=0
    _
  %s6 = ssub.s32 1, %s4
  %s7 = scalar_select 0, %s6, %s4
  // Predicated region
  $region2: #{dp_rnn_forward.8} parent=0 // pred_check
    _
  $region3: #{dp_rnn_forward.8} parent=0 // pred_check_branch
    %9 = sbr.rel (0) target = $region5
  $region4: #{dp_rnn_forward.8} parent=0 // pred_region
    _
  $region5: #{dp_rnn_forward.8} parent=0 // pred_fallthru
    _
  // Predicated region
  $region6: #{dp_rnn_forward.8} parent=0 // pred_check
    _
  $region7: #{dp_rnn_forward.8} parent=0 // pred_check_branch
    %11 = sbr.rel (0) target = $region9
  $region8: #{dp_rnn_forward.8} parent=0 // pred_region
    _
  $region9: #{dp_rnn_forward.8} parent=0 // pred_fallthru
    _
  // Predicated region
  $region10: #{dp_rnn_forward.8} parent=0 // pred_check
    _
  $region11: #{dp_rnn_forward.8} parent=0 // pred_check_branch
    %13 = sbr.rel (0) target = $region13
  $region12: #{dp_rnn_forward.8} parent=0 // pred_region
    _
  $region13: #{dp_rnn_forward.8} parent=0 // pred_fallthru
    _
  %v15 = vld [vmem:[%s0] sm:$0xff]
  %v16 = vld [vmem:[%s0 + $0x8] sm:$0xff]
  %v17 = vpack.c.bf16 %v16, %v15
  %v18 = vld [vmem:[%s1] sm:$0xf]
  %v19 = vld [vmem:[%s1 + $0x4] sm:$0xf]
  %v20 = vld [vmem:[%s1 + $0x8] sm:$0xf]
  %v21 = vld [vmem:[%s1 + $0xc] sm:$0xf]
  %v22 = vld [vmem:[%s1 + $0x10] sm:$0xf]
  %v23 = vld [vmem:[%s1 + $0x14] sm:$0xf]
  %v24 = vld [vmem:[%s1 + $0x18] sm:$0xf]
  %v25 = vld [vmem:[%s1 + $0x1c] sm:$0xf]
  %v26 = vld [vmem:[%s2] sm:$0x1]
  %v28 = vlaneseq
  %v29 = vshrl.u32 %v28, 7
  %v30 = vsub.s32 0, %v29
  %v31 = vrot.slane %v26, %v30
  %v41 = vunpack.c.l.b16 %v18
  %v42 = vunpack.c.l.b16 %v19
  %v43 = vunpack.c.l.b16 %v20
  %v44 = vunpack.c.l.b16 %v21
  %v45 = vunpack.c.l.b16 %v22
  %v46 = vunpack.c.l.b16 %v23
  %v47 = vunpack.c.l.b16 %v24
  %v48 = vunpack.c.l.b16 %v25
  %v49 = vpack.c.b16 %v42, %v41
  %v50 = vpack.c.b16 %v44, %v43
  %v51 = vpack.c.b16 %v46, %v45
  %v52 = vpack.c.b16 %v48, %v47
  %vm57 = vcmask 523264
  %v59 = vsel %vm57, %v17, 0
  %61 = vmatprep.subr.bf16.mxu0 0
  %62 = vmatpush1.bf16.msra.mxu0 %v49
  %63 = vmatprep.subr.bf16.mxu0 0
  %64 = vmatpush1.bf16.msra.mxu0 %v50
  %65 = vmatprep.subr.bf16.mxu0 0
  %66 = vmatpush1.bf16.msra.mxu0 %v51
  %67 = vmatprep.subr.bf16.mxu0 0
  %68 = vmatpush1.bf16.msra.mxu0 %v52
  %69 = vmatprep.subr.bf16.mxu0 0
  %70 = vmatpush1.bf16.msra.mxu0 0
  %71 = vmatprep.subr.bf16.mxu0 0
  %72 = vmatpush1.bf16.msra.mxu0 0
  %73 = vmatprep.subr.bf16.mxu0 0
  %74 = vmatpush1.bf16.msra.mxu0 0
  %75 = vmatprep.subr.bf16.mxu0 0
  %76 = vmatpush1.bf16.msra.mxu0 0
  %77 = vmatprep.subr.bf16.mxu0 0
  %78 = vmatpush1.bf16.msra.mxu0 0
  %79 = vmatprep.subr.bf16.mxu0 0
  %80 = vmatpush1.bf16.msra.mxu0 0
  %81 = vmatprep.subr.bf16.mxu0 0
  %82 = vmatpush1.bf16.msra.mxu0 0
  %83 = vmatprep.subr.bf16.mxu0 0
  %84 = vmatpush1.bf16.msra.mxu0 0
  %85 = vmatprep.subr.bf16.mxu0 0
  %86 = vmatpush1.bf16.msra.mxu0 0
  %87 = vmatprep.subr.bf16.mxu0 0
  %88 = vmatpush1.bf16.msra.mxu0 0
  %89 = vmatprep.subr.bf16.mxu0 0
  %90 = vmatpush1.bf16.msra.mxu0 0
  %91 = vmatprep.subr.bf16.mxu0 0
  %92 = vmatpush1.bf16.msra.mxu0 0
  %93 = vmatprep.mubr.bf16.mxu0 0
  %94 = vmatmul.mubr.bf16.gmra.mrb[0].mxu0 %v59
  %v95 = vpop.f32.mrb[0].mxu0
  %v96 = vadd.f32 %v31, %v95
  %v97 = vpop.f32.mrb[0].mxu0
  %v98 = vpop.f32.mrb[0].mxu0
  %v99 = vadd.f32 %v31, %v98
  %v100 = vpop.f32.mrb[0].mxu0
  %101 = vdwg.mxu0
  %102 = vst [vmem:[%s3] sm:$0xff] %v96
  %103 = vst [vmem:[%s3 + $0x8] sm:$0xff] %v99
  // Predicated region
  $region14: #{dp_rnn_forward.8} parent=0 // pred_check
    _
  $region15: #{dp_rnn_forward.8} parent=0 // pred_check_branch
    %105 = sbr.rel (0) target = $region17
  $region16: #{dp_rnn_forward.8} parent=0 // pred_region
    _
  $region17: #{dp_rnn_forward.8} parent=0 // pred_fallthru
    _
  // Predicated region
  $region18: #{dp_rnn_forward.8} parent=0 // pred_check
    _
  $region19: #{dp_rnn_forward.8} parent=0 // pred_check_branch
    %107 = sbr.rel (0) target = $region21
  $region20: #{dp_rnn_forward.8} parent=0 // pred_region
    _
  $region21: #{dp_rnn_forward.8} parent=0 // pred_fallthru
    _

// kernel: dp_rnn_forward.9
$region0: #{dp_rnn_forward.9}
  #allocation0 [shape = 'u32[]', space=smem, size = 0x4, offset = 0x4, fixed_abs, tag = 'smem constant byte address 0x4 - core index']
  #allocation1 [shape = 'u32[144,128]{1,0:T(1,128)}', space=vmem, size = 0x12000, scoped, tag = 'internal scratch']
  %s0 = inlined_call_operand.vmem [shape: f32[2,8,128], index: 0, kind: input, shape index: {}]
  %s1 = inlined_call_operand.hbm [shape: f32[2,8,8], index: 1, kind: output, shape index: {}]
  %s2 = sld [smem:[#allocation0]]
  $region14: #{dp_rnn_forward.9} parent=0
    _
  %s4 = ssub.s32 1, %s2
  %s5 = scalar_select 0, %s4, %s2
  $region1: #{dp_rnn_forward.9} parent=0
    #allocation2 [shape = 'u8[8192]{0}', space=vmem, size = 0x2000, scoped, tag = 'output window, operand 0, single buffered']
    #allocation3 [shape = 's32[1]{0}', space=sflag, size = 0x4, scoped, tag = 'scoped memory for dp_rnn_forward.9']
    %6 = vsyncpa [#allocation3], 0
    // Predicated region
    $region2: #{dp_rnn_forward.9} parent=1 // pred_check
      _
    $region3: #{dp_rnn_forward.9} parent=1 // pred_check_branch
      %8 = sbr.rel (0) target = $region5
    $region4: #{dp_rnn_forward.9} parent=1 // pred_region
      _
    $region5: #{dp_rnn_forward.9} parent=1 // pred_fallthru
      _
    %v10 = vld [vmem:[%s0] sm:$0xff]
    %v11 = vld [vmem:[%s0 + $0x8] sm:$0xff]
    %v12 = vpack.c.bf16 %v10, %v10
    %v13 = vpack.c.bf16 %v11, %v11
    %15 = vrot.lane.b32.xlu0 %v12, 64
    %v16 = vpop.permute.xlu0 %15
    %vm17 = vcmask 523264
    %v19 = vsel %vm17, %v12, 0
    %v22 = vsel %vm17, %v16, 0
    %24 = vmatprep.subr.bf16.mxu0 0
    %25 = vmatpush1.bf16.xpose.msra.mxu0 %v22
    %26 = vmatprep.subr.bf16.mxu0 0
    %27 = vmatpush1.bf16.xpose.msra.mxu0 0
    %28 = vmatprep.subr.bf16.mxu0 0
    %29 = vmatpush1.bf16.xpose.msra.mxu0 0
    %30 = vmatprep.subr.bf16.mxu0 0
    %31 = vmatpush1.bf16.xpose.msra.mxu0 0
    %32 = vmatprep.subr.bf16.mxu0 0
    %33 = vmatpush1.bf16.xpose.msra.mxu0 0
    %34 = vmatprep.subr.bf16.mxu0 0
    %35 = vmatpush1.bf16.xpose.msra.mxu0 0
    %36 = vmatprep.subr.bf16.mxu0 0
    %37 = vmatpush1.bf16.xpose.msra.mxu0 0
    %38 = vmatprep.subr.bf16.mxu0 0
    %39 = vmatpush1.bf16.xpose.msra.mxu0 0
    %40 = vmatprep.subr.bf16.mxu0 0
    %41 = vmatpush1.bf16.xpose.msra.mxu0 0
    %42 = vmatprep.subr.bf16.mxu0 0
    %43 = vmatpush1.bf16.xpose.msra.mxu0 0
    %44 = vmatprep.subr.bf16.mxu0 0
    %45 = vmatpush1.bf16.xpose.msra.mxu0 0
    %46 = vmatprep.subr.bf16.mxu0 0
    %47 = vmatpush1.bf16.xpose.msra.mxu0 0
    %48 = vmatprep.subr.bf16.mxu0 0
    %49 = vmatpush1.bf16.xpose.msra.mxu0 0
    %50 = vmatprep.subr.bf16.mxu0 0
    %51 = vmatpush1.bf16.xpose.msra.mxu0 0
    %52 = vmatprep.subr.bf16.mxu0 0
    %53 = vmatpush1.bf16.xpose.msra.mxu0 0
    %54 = vmatprep.subr.bf16.mxu0 0
    %55 = vmatpush1.bf16.xpose.msra.mxu0 0
    %56 = vmatprep.mubr.bf16.mxu0 0
    %57 = vmatmul.mubr.bf16.gmra.mrb[0].mxu0 %v19
    %v58 = vpop.f32.mrb[0].mxu0
    %v59 = vadd.f32 0.0, %v58
    %v60 = vpop.f32.mrb[0].mxu0
    %v61 = vpop.f32.mrb[0].mxu0
    %v62 = vpop.f32.mrb[0].mxu0
    %63 = vdwg.mxu0
    %65 = vrot.lane.b32.xlu0 %v13, 64
    %v66 = vpop.permute.xlu0 %65
    %v68 = vsel %vm17, %v13, 0
    %v71 = vsel %vm17, %v66, 0
    %73 = vmatprep.subr.bf16.mxu0 0
    %74 = vmatpush1.bf16.xpose.msra.mxu0 %v71
    %75 = vmatprep.subr.bf16.mxu0 0
    %76 = vmatpush1.bf16.xpose.msra.mxu0 0
    %77 = vmatprep.subr.bf16.mxu0 0
    %78 = vmatpush1.bf16.xpose.msra.mxu0 0
    %79 = vmatprep.subr.bf16.mxu0 0
    %80 = vmatpush1.bf16.xpose.msra.mxu0 0
    %81 = vmatprep.subr.bf16.mxu0 0
    %82 = vmatpush1.bf16.xpose.msra.mxu0 0
    %83 = vmatprep.subr.bf16.mxu0 0
    %84 = vmatpush1.bf16.xpose.msra.mxu0 0
    %85 = vmatprep.subr.bf16.mxu0 0
    %86 = vmatpush1.bf16.xpose.msra.mxu0 0
    %87 = vmatprep.subr.bf16.mxu0 0
    %88 = vmatpush1.bf16.xpose.msra.mxu0 0
    %89 = vmatprep.subr.bf16.mxu0 0
    %90 = vmatpush1.bf16.xpose.msra.mxu0 0
    %91 = vmatprep.subr.bf16.mxu0 0
    %92 = vmatpush1.bf16.xpose.msra.mxu0 0
    %93 = vmatprep.subr.bf16.mxu0 0
    %94 = vmatpush1.bf16.xpose.msra.mxu0 0
    %95 = vmatprep.subr.bf16.mxu0 0
    %96 = vmatpush1.bf16.xpose.msra.mxu0 0
    %97 = vmatprep.subr.bf16.mxu0 0
    %98 = vmatpush1.bf16.xpose.msra.mxu0 0
    %99 = vmatprep.subr.bf16.mxu0 0
    %100 = vmatpush1.bf16.xpose.msra.mxu0 0
    %101 = vmatprep.subr.bf16.mxu0 0
    %102 = vmatpush1.bf16.xpose.msra.mxu0 0
    %103 = vmatprep.subr.bf16.mxu0 0
    %104 = vmatpush1.bf16.xpose.msra.mxu0 0
    %105 = vmatprep.mubr.bf16.mxu0 0
    %106 = vmatmul.mubr.bf16.gmra.mrb[0].mxu0 %v68
    %v107 = vpop.f32.mrb[0].mxu0
    %v108 = vadd.f32 0.0, %v107
    %v109 = vpop.f32.mrb[0].mxu0
    %v110 = vpop.f32.mrb[0].mxu0
    %v111 = vpop.f32.mrb[0].mxu0
    %112 = vdwg.mxu0
    %v113 = vmul.f32 %v59, 0.125
    %v114 = vmul.f32 %v108, 0.125
    %v115 = vlaneseq
    %v116 = vshrl.u32 %v115, 7
    %v117 = vlaneseq
    %v118 = vand.u32 %v117, 127
    %vm119 = vcmp.gt.s32.totalorder %v118, %v116
    %v120 = vsel %vm119, 1, 0
    %vm121 = vcmp.eq.s32.totalorder %v120, 1
    %v122 = vsel %vm121, -inf, %v113
    %v123 = vsel %vm121, -inf, %v114
    %vm124 = vcmask 64512
    %v125 = vsel %vm124, %v122, -inf
    %126 = vmax.xlane.f32.xlu0 %v125
    %v127 = vpop.xlane.xlu0 %126
    %v128 = vsel %vm124, %v123, -inf
    %129 = vmax.xlane.f32.xlu0 %v128
    %v130 = vpop.xlane.xlu0 %129
    %v131 = vsub.f32 %v122, %v127
    %v132 = vsub.f32 %v123, %v130
    %v133 = vmul.f32 %v131, 1.442695
    %v134 = vpow.pop %v133
    %v135 = vmul.f32 %v132, 1.442695
    %v136 = vpow.pop %v135
    %v137 = vsel %vm124, %v134, 0.0
    %138 = vadd.xlane.f32.xlu0 %v137
    %v139 = vpop.xlane.xlu0 %138
    %v140 = vsel %vm124, %v136, 0.0
    %141 = vadd.xlane.f32.xlu0 %v140
    %v142 = vpop.xlane.xlu0 %141
    %v143 = vrcp.pop %v139
    %v144 = vrcp.pop %v142
    %v145 = vmul.f32 %v134, %v143
    %v146 = vmul.f32 %v136, %v144
    %147 = vst.msk [vmem:[#allocation2] sm:$0xff] %vm124, %v145
    %148 = vst.msk [vmem:[#allocation2 + $0x8] sm:$0xff] %vm124, %v146
    // Predicated region
    $region6: #{dp_rnn_forward.9} parent=1 // pred_check
      _
    $region7: #{dp_rnn_forward.9} parent=1 // pred_check_branch
      %150 = sbr.rel (0) target = $region9
    $region8: #{dp_rnn_forward.9} parent=1 // pred_region
      %s152 = ssub.s32 256, 256
      %153 = vsyncadd [#allocation3], %s152
      %s154 = sshll.u32 [#allocation2], 4
      %s155 = int_to_ptr.vmem [resolvable:$true] %s154
      %160 = dma.vmem_to_hbm [thread:$0]  %s155, 256, %s1, [#allocation3], 128, 128, 8
    $region9: #{dp_rnn_forward.9} parent=1 // pred_fallthru
      _
    // Predicated region
    $region10: #{dp_rnn_forward.9} parent=1 // pred_check
      _
    $region11: #{dp_rnn_forward.9} parent=1 // pred_check_branch
      %162 = sbr.rel (0) target = $region13
    $region12: #{dp_rnn_forward.9} parent=1 // pred_region
      %163 = dma.done [#allocation3], 256
    $region13: #{dp_rnn_forward.9} parent=1 // pred_fallthru
      _
    %164 = vsyncpa [#allocation3], 1

// kernel: dp_rnn_forward.7
$region0: #{dp_rnn_forward.7}
  #allocation0 [shape = 'u32[]', space=smem, size = 0x4, offset = 0x4, fixed_abs, tag = 'smem constant byte address 0x4 - core index']
  #allocation1 [shape = 'u32[144,128]{1,0:T(1,128)}', space=vmem, size = 0x12000, scoped, tag = 'internal scratch']
  %s0 = inlined_call_operand.vmem [shape: f32[16,64], index: 0, kind: input, shape index: {}]
  %s1 = inlined_call_operand.vmem [shape: bf16[64,128], index: 1, kind: input, shape index: {}]
  %s2 = inlined_call_operand.vmem [shape: f32[1,128], index: 2, kind: input, shape index: {}]
  %s3 = inlined_call_operand.hbm [shape: f32[16,128], index: 3, kind: output, shape index: {}]
  %s4 = sld [smem:[#allocation0]]
  $region22: #{dp_rnn_forward.7} parent=0
    _
  %s6 = ssub.s32 1, %s4
  %s7 = scalar_select 0, %s6, %s4
  $region1: #{dp_rnn_forward.7} parent=0
    #allocation2 [shape = 'u8[8192]{0}', space=vmem, size = 0x2000, scoped, tag = 'output window, operand 0, single buffered']
    #allocation3 [shape = 's32[1]{0}', space=sflag, size = 0x4, scoped, tag = 'scoped memory for dp_rnn_forward.7']
    %8 = vsyncpa [#allocation3], 0
    // Predicated region
    $region2: #{dp_rnn_forward.7} parent=1 // pred_check
      _
    $region3: #{dp_rnn_forward.7} parent=1 // pred_check_branch
      %10 = sbr.rel (0) target = $region5
    $region4: #{dp_rnn_forward.7} parent=1 // pred_region
      _
    $region5: #{dp_rnn_forward.7} parent=1 // pred_fallthru
      _
    // Predicated region
    $region6: #{dp_rnn_forward.7} parent=1 // pred_check
      _
    $region7: #{dp_rnn_forward.7} parent=1 // pred_check_branch
      %12 = sbr.rel (0) target = $region9
    $region8: #{dp_rnn_forward.7} parent=1 // pred_region
      _
    $region9: #{dp_rnn_forward.7} parent=1 // pred_fallthru
      _
    // Predicated region
    $region10: #{dp_rnn_forward.7} parent=1 // pred_check
      _
    $region11: #{dp_rnn_forward.7} parent=1 // pred_check_branch
      %14 = sbr.rel (0) target = $region13
    $region12: #{dp_rnn_forward.7} parent=1 // pred_region
      _
    $region13: #{dp_rnn_forward.7} parent=1 // pred_fallthru
      _
    %v16 = vld [vmem:[%s0] sm:$0xff]
    %v17 = vld [vmem:[%s0 + $0x8] sm:$0xff]
    %v18 = vpack.c.bf16 %v17, %v16
    %v19 = vld [vmem:[%s1] sm:$0xf]
    %v20 = vld [vmem:[%s1 + $0x4] sm:$0xf]
    %v21 = vld [vmem:[%s1 + $0x8] sm:$0xf]
    %v22 = vld [vmem:[%s1 + $0xc] sm:$0xf]
    %v23 = vld [vmem:[%s1 + $0x10] sm:$0xf]
    %v24 = vld [vmem:[%s1 + $0x14] sm:$0xf]
    %v25 = vld [vmem:[%s1 + $0x18] sm:$0xf]
    %v26 = vld [vmem:[%s1 + $0x1c] sm:$0xf]
    %v27 = vld [vmem:[%s2] sm:$0x1]
    %v29 = vlaneseq
    %v30 = vshrl.u32 %v29, 7
    %v31 = vsub.s32 0, %v30
    %v32 = vrot.slane %v27, %v31
    %v42 = vunpack.c.l.b16 %v19
    %v43 = vunpack.c.l.b16 %v20
    %v44 = vunpack.c.l.b16 %v21
    %v45 = vunpack.c.l.b16 %v22
    %v46 = vunpack.c.l.b16 %v23
    %v47 = vunpack.c.l.b16 %v24
    %v48 = vunpack.c.l.b16 %v25
    %v49 = vunpack.c.l.b16 %v26
    %v50 = vpack.c.b16 %v43, %v42
    %v51 = vpack.c.b16 %v45, %v44
    %v52 = vpack.c.b16 %v47, %v46
    %v53 = vpack.c.b16 %v49, %v48
    %vm58 = vcmask 523264
    %v60 = vsel %vm58, %v18, 0
    %62 = vmatprep.subr.bf16.mxu0 0
    %63 = vmatpush1.bf16.msra.mxu0 %v50
    %64 = vmatprep.subr.bf16.mxu0 0
    %65 = vmatpush1.bf16.msra.mxu0 %v51
    %66 = vmatprep.subr.bf16.mxu0 0
    %67 = vmatpush1.bf16.msra.mxu0 %v52
    %68 = vmatprep.subr.bf16.mxu0 0
    %69 = vmatpush1.bf16.msra.mxu0 %v53
    %70 = vmatprep.subr.bf16.mxu0 0
    %71 = vmatpush1.bf16.msra.mxu0 0
    %72 = vmatprep.subr.bf16.mxu0 0
    %73 = vmatpush1.bf16.msra.mxu0 0
    %74 = vmatprep.subr.bf16.mxu0 0
    %75 = vmatpush1.bf16.msra.mxu0 0
    %76 = vmatprep.subr.bf16.mxu0 0
    %77 = vmatpush1.bf16.msra.mxu0 0
    %78 = vmatprep.subr.bf16.mxu0 0
    %79 = vmatpush1.bf16.msra.mxu0 0
    %80 = vmatprep.subr.bf16.mxu0 0
    %81 = vmatpush1.bf16.msra.mxu0 0
    %82 = vmatprep.subr.bf16.mxu0 0
    %83 = vmatpush1.bf16.msra.mxu0 0
    %84 = vmatprep.subr.bf16.mxu0 0
    %85 = vmatpush1.bf16.msra.mxu0 0
    %86 = vmatprep.subr.bf16.mxu0 0
    %87 = vmatpush1.bf16.msra.mxu0 0
    %88 = vmatprep.subr.bf16.mxu0 0
    %89 = vmatpush1.bf16.msra.mxu0 0
    %90 = vmatprep.subr.bf16.mxu0 0
    %91 = vmatpush1.bf16.msra.mxu0 0
    %92 = vmatprep.subr.bf16.mxu0 0
    %93 = vmatpush1.bf16.msra.mxu0 0
    %94 = vmatprep.mubr.bf16.mxu0 0
    %95 = vmatmul.mubr.bf16.gmra.mrb[0].mxu0 %v60
    %v96 = vpop.f32.mrb[0].mxu0
    %v97 = vadd.f32 %v32, %v96
    %v98 = vpop.f32.mrb[0].mxu0
    %v99 = vpop.f32.mrb[0].mxu0
    %v100 = vadd.f32 %v32, %v99
    %v101 = vpop.f32.mrb[0].mxu0
    %102 = vdwg.mxu0
    %103 = vst [vmem:[#allocation2] sm:$0xff] %v97
    %104 = vst [vmem:[#allocation2 + $0x8] sm:$0xff] %v100
    // Predicated region
    $region14: #{dp_rnn_forward.7} parent=1 // pred_check
      _
    $region15: #{dp_rnn_forward.7} parent=1 // pred_check_branch
      %106 = sbr.rel (0) target = $region17
    $region16: #{dp_rnn_forward.7} parent=1 // pred_region
      %s108 = ssub.s32 256, 256
      %109 = vsyncadd [#allocation3], %s108
      %s110 = sshll.u32 [#allocation2], 4
      %s111 = int_to_ptr.vmem [resolvable:$true] %s110
      %116 = dma.vmem_to_hbm [thread:$0]  %s111, 256, %s3, [#allocation3], 128, 128, 8
    $region17: #{dp_rnn_forward.7} parent=1 // pred_fallthru
      _
    // Predicated region
    $region18: #{dp_rnn_forward.7} parent=1 // pred_check
      _
    $region19: #{dp_rnn_forward.7} parent=1 // pred_check_branch
      %118 = sbr.rel (0) target = $region21
    $region20: #{dp_rnn_forward.7} parent=1 // pred_region
      %119 = dma.done [#allocation3], 256
    $region21: #{dp_rnn_forward.7} parent=1 // pred_fallthru
      _
    %120 = vsyncpa [#allocation3], 1

// kernel: dp_rnn_forward.5
$region0: #{dp_rnn_forward.5}
  #allocation0 [shape = 'u32[]', space=smem, size = 0x4, offset = 0x4, fixed_abs, tag = 'smem constant byte address 0x4 - core index']
  #allocation1 [shape = 'u32[144,128]{1,0:T(1,128)}', space=vmem, size = 0x12000, scoped, tag = 'internal scratch']
  #allocation2 [shape = 'f32[2,64]{1,0:T(2,128)}', space=vmem, size = 0x400, scoped, tag = 'scratch operand']
  #allocation3 [shape = 'f32[2,64]{1,0:T(2,128)}', space=vmem, size = 0x400, scoped, tag = 'scratch operand']
  #allocation4 [shape = 'f32[4,2,256]{2,1,0:T(2,128)}', space=vmem, size = 0x2000, scoped, tag = 'scratch operand']
  %s0 = inlined_call_operand.vmem [shape: f32[8,2,64], index: 0, kind: input, shape index: {}]
  %s1 = inlined_call_operand.vmem [shape: bf16[64,256], index: 1, kind: input, shape index: {}]
  %s2 = inlined_call_operand.vmem [shape: bf16[64,256], index: 2, kind: input, shape index: {}]
  %s3 = inlined_call_operand.vmem [shape: f32[1,256], index: 3, kind: input, shape index: {}]
  %s4 = inlined_call_operand.vmem [shape: f32[2,64], index: 4, kind: input, shape index: {}]
  %s5 = inlined_call_operand.vmem [shape: f32[2,64], index: 5, kind: input, shape index: {}]
  %s6 = inlined_call_operand.vmem [shape: f32[8,2,64], index: 6, kind: output, shape index: {0}]
  %s7 = inlined_call_operand.hbm [shape: f32[2,64], index: 7, kind: output, shape index: {1}]
  %s8 = inlined_call_operand.hbm [shape: f32[2,64], index: 8, kind: output, shape index: {2}]
  %9 = xla_tuple %s6, %s7, %s8
  %s10 = sld [smem:[#allocation0]]
  $region81: #{dp_rnn_forward.5} parent=0
    _
  %s12 = ssub.s32 1, %s10
  %s13 = scalar_select 0, %s12, %s10
  $region1: #{dp_rnn_forward.5} parent=0
    #allocation5 [shape = 'u8[1024]{0}', space=vmem, size = 0x400, scoped, tag = 'output window, operand 1, single buffered']
    #allocation6 [shape = 's32[2]{0}', space=sflag, size = 0x8, scoped, tag = 'scoped memory for dp_rnn_forward.5']
    #allocation7 [shape = 'u8[1024]{0}', space=vmem, size = 0x400, scoped, tag = 'output window, operand 2, single buffered']
    #allocation8 [shape = 's32[1]{0}', space=sflag, size = 0x4, scoped, tag = 'scoped memory for dp_rnn_forward.5']
    %14 = vsyncpa [#allocation6], 0
    %15 = vsyncpa [#allocation8], 0
    loop: start=0, step=1, limit=4
    $region2: #{dp_rnn_forward.5} parent=1 // loop_pre_header
      _
    $region3: #{dp_rnn_forward.5} parent=1 // loop_header
      %s17 = sphi 0, %s21
      %p18 = scmp.ge.s32.totalorder %s17, 4
      %s27 = sphi 0, %s29
      %s30 = sphi 0, %s27
      %s31 = sphi 0, %s30
      %s47 = sphi 0, %s31
      %s51 = sphi 0, %s51
      %s53 = sphi 0, %s51
      %s54 = sphi 0, %s53
      %s68 = sphi 0, %s54
      %s72 = sphi 0, %s72
      %s74 = sphi 0, %s72
      %s75 = sphi 0, %s74
      %s89 = sphi 0, %s75
      %s93 = sphi 0, %s93
      %s95 = sphi 0, %s93
      %s96 = sphi 0, %s95
      %s110 = sphi 0, %s96
      %s114 = sphi 0, %s114
      %s116 = sphi 0, %s114
      %s117 = sphi 0, %s116
      %s131 = sphi 0, %s117
      %s135 = sphi 0, %s135
      %s137 = sphi 0, %s135
      %s138 = sphi 0, %s137
      %s152 = sphi 0, %s138
      %s158 = sphi 0, %s160
      %s161 = sphi 0, %s158
      %s162 = sphi 0, %s161
      %s178 = sphi 0, %s162
      %s182 = sphi 0, %s182
      %s184 = sphi 0, %s182
      %s185 = sphi 0, %s184
      %s199 = sphi 0, %s185
      %s203 = sphi 0, %s203
      %s205 = sphi 0, %s203
      %s206 = sphi 0, %s205
      %s220 = sphi 0, %s206
    $region4: #{dp_rnn_forward.5} parent=1 // loop_header_branch
      %20 = sbr.rel (%p18) target = $region8
    $region5: #{dp_rnn_forward.5} parent=1 // loop_body
      %s22 = ssub.s32 %s17, 1
      %s23 = ssub.s32 %s17, 2
      %s24 = sadd.s32 %s17, 1
      %s25 = ssub.s32 %s17, %s24
      %p26 = scmp.eq.s32.totalorder %s25, 0
      %s28 = sadd.s32 %s27, 1
      %s29 = scalar_select %p26, %s27, %s28
      %p32 = pneg %p26
      %p33 = scmp.eq.s32.totalorder %s17, 1
      %p34 = por %p32, %p33
      %p35 = scmp.ne.s32.totalorder %s27, %s30
      %p36 = scmp.eq.s32.totalorder %s17, 0
      %p37 = por %p35, %p36
      %p38 = scmp.ne.s32.totalorder %s27, %s30
      %p39 = scmp.eq.s32.totalorder %s22, 1
      %p40 = por %p38, %p39
      %p41 = scmp.ne.s32.totalorder %s30, %s31
      %p42 = scmp.eq.s32.totalorder %s22, 0
      %p43 = por %p41, %p42
      %p44 = scmp.ne.s32.totalorder %s30, %s31
      %p45 = scmp.eq.s32.totalorder %s23, 1
      %p46 = por %p44, %p45
      %p48 = scmp.ne.s32.totalorder %s31, %s47
      %p49 = scmp.eq.s32.totalorder %s23, 0
      %p50 = por %p48, %p49
      %s52 = sadd.s32 %s51, 1
      %p55 = scmp.eq.s32.totalorder %s17, 1
      %p56 = scmp.ne.s32.totalorder %s51, %s53
      %p57 = scmp.eq.s32.totalorder %s17, 0
      %p58 = por %p56, %p57
      %p59 = scmp.ne.s32.totalorder %s51, %s53
      %p60 = scmp.eq.s32.totalorder %s22, 1
      %p61 = por %p59, %p60
      %p62 = scmp.ne.s32.totalorder %s53, %s54
      %p63 = scmp.eq.s32.totalorder %s22, 0
      %p64 = por %p62, %p63
      %p65 = scmp.ne.s32.totalorder %s53, %s54
      %p66 = scmp.eq.s32.totalorder %s23, 1
      %p67 = por %p65, %p66
      %p69 = scmp.ne.s32.totalorder %s54, %s68
      %p70 = scmp.eq.s32.totalorder %s23, 0
      %p71 = por %p69, %p70
      %s73 = sadd.s32 %s72, 1
      %p76 = scmp.eq.s32.totalorder %s17, 1
      %p77 = scmp.ne.s32.totalorder %s72, %s74
      %p78 = scmp.eq.s32.totalorder %s17, 0
      %p79 = por %p77, %p78
      %p80 = scmp.ne.s32.totalorder %s72, %s74
      %p81 = scmp.eq.s32.totalorder %s22, 1
      %p82 = por %p80, %p81
      %p83 = scmp.ne.s32.totalorder %s74, %s75
      %p84 = scmp.eq.s32.totalorder %s22, 0
      %p85 = por %p83, %p84
      %p86 = scmp.ne.s32.totalorder %s74, %s75
      %p87 = scmp.eq.s32.totalorder %s23, 1
      %p88 = por %p86, %p87
      %p90 = scmp.ne.s32.totalorder %s75, %s89
      %p91 = scmp.eq.s32.totalorder %s23, 0
      %p92 = por %p90, %p91
      %s94 = sadd.s32 %s93, 1
      %p97 = scmp.eq.s32.totalorder %s17, 1
      %p98 = scmp.ne.s32.totalorder %s93, %s95
      %p99 = scmp.eq.s32.totalorder %s17, 0
      %p100 = por %p98, %p99
      %p101 = scmp.ne.s32.totalorder %s93, %s95
      %p102 = scmp.eq.s32.totalorder %s22, 1
      %p103 = por %p101, %p102
      %p104 = scmp.ne.s32.totalorder %s95, %s96
      %p105 = scmp.eq.s32.totalorder %s22, 0
      %p106 = por %p104, %p105
      %p107 = scmp.ne.s32.totalorder %s95, %s96
      %p108 = scmp.eq.s32.totalorder %s23, 1
      %p109 = por %p107, %p108
      %p111 = scmp.ne.s32.totalorder %s96, %s110
      %p112 = scmp.eq.s32.totalorder %s23, 0
      %p113 = por %p111, %p112
      %s115 = sadd.s32 %s114, 1
      %p118 = scmp.eq.s32.totalorder %s17, 1
      %p119 = scmp.ne.s32.totalorder %s114, %s116
      %p120 = scmp.eq.s32.totalorder %s17, 0
      %p121 = por %p119, %p120
      %p122 = scmp.ne.s32.totalorder %s114, %s116
      %p123 = scmp.eq.s32.totalorder %s22, 1
      %p124 = por %p122, %p123
      %p125 = scmp.ne.s32.totalorder %s116, %s117
      %p126 = scmp.eq.s32.totalorder %s22, 0
      %p127 = por %p125, %p126
      %p128 = scmp.ne.s32.totalorder %s116, %s117
      %p129 = scmp.eq.s32.totalorder %s23, 1
      %p130 = por %p128, %p129
      %p132 = scmp.ne.s32.totalorder %s117, %s131
      %p133 = scmp.eq.s32.totalorder %s23, 0
      %p134 = por %p132, %p133
      %s136 = sadd.s32 %s135, 1
      %p139 = scmp.eq.s32.totalorder %s17, 1
      %p140 = scmp.ne.s32.totalorder %s135, %s137
      %p141 = scmp.eq.s32.totalorder %s17, 0
      %p142 = por %p140, %p141
      %p143 = scmp.ne.s32.totalorder %s135, %s137
      %p144 = scmp.eq.s32.totalorder %s22, 1
      %p145 = por %p143, %p144
      %p146 = scmp.ne.s32.totalorder %s137, %s138
      %p147 = scmp.eq.s32.totalorder %s22, 0
      %p148 = por %p146, %p147
      %p149 = scmp.ne.s32.totalorder %s137, %s138
      %p150 = scmp.eq.s32.totalorder %s23, 1
      %p151 = por %p149, %p150
      %p153 = scmp.ne.s32.totalorder %s138, %s152
      %p154 = scmp.eq.s32.totalorder %s23, 0
      %p155 = por %p153, %p154
      %s156 = ssub.s32 %s17, %s24
      %p157 = scmp.eq.s32.totalorder %s156, 0
      %s159 = sadd.s32 %s158, 1
      %s160 = scalar_select %p157, %s158, %s159
      %p163 = pneg %p157
      %p164 = scmp.eq.s32.totalorder %s17, 1
      %p165 = por %p163, %p164
      %p166 = scmp.ne.s32.totalorder %s158, %s161
      %p167 = scmp.eq.s32.totalorder %s17, 0
      %p168 = por %p166, %p167
      %p169 = scmp.ne.s32.totalorder %s158, %s161
      %p170 = scmp.eq.s32.totalorder %s22, 1
      %p171 = por %p169, %p170
      %p172 = scmp.ne.s32.totalorder %s161, %s162
      %p173 = scmp.eq.s32.totalorder %s22, 0
      %p174 = por %p172, %p173
      %p175 = scmp.ne.s32.totalorder %s161, %s162
      %p176 = scmp.eq.s32.totalorder %s23, 1
      %p177 = por %p175, %p176
      %p179 = scmp.ne.s32.totalorder %s162, %s178
      %p180 = scmp.eq.s32.totalorder %s23, 0
      %p181 = por %p179, %p180
      %s183 = sadd.s32 %s182, 1
      %p186 = scmp.eq.s32.totalorder %s17, 1
      %p187 = scmp.ne.s32.totalorder %s182, %s184
      %p188 = scmp.eq.s32.totalorder %s17, 0
      %p189 = por %p187, %p188
      %p190 = scmp.ne.s32.totalorder %s182, %s184
      %p191 = scmp.eq.s32.totalorder %s22, 1
      %p192 = por %p190, %p191
      %p193 = scmp.ne.s32.totalorder %s184, %s185
      %p194 = scmp.eq.s32.totalorder %s22, 0
      %p195 = por %p193, %p194
      %p196 = scmp.ne.s32.totalorder %s184, %s185
      %p197 = scmp.eq.s32.totalorder %s23, 1
      %p198 = por %p196, %p197
      %p200 = scmp.ne.s32.totalorder %s185, %s199
      %p201 = scmp.eq.s32.totalorder %s23, 0
      %p202 = por %p200, %p201
      %s204 = sadd.s32 %s203, 1
      %p207 = scmp.eq.s32.totalorder %s17, 1
      %p208 = scmp.ne.s32.totalorder %s203, %s205
      %p209 = scmp.eq.s32.totalorder %s17, 0
      %p210 = por %p208, %p209
      %p211 = scmp.ne.s32.totalorder %s203, %s205
      %p212 = scmp.eq.s32.totalorder %s22, 1
      %p213 = por %p211, %p212
      %p214 = scmp.ne.s32.totalorder %s205, %s206
      %p215 = scmp.eq.s32.totalorder %s22, 0
      %p216 = por %p214, %p215
      %p217 = scmp.ne.s32.totalorder %s205, %s206
      %p218 = scmp.eq.s32.totalorder %s23, 1
      %p219 = por %p217, %p218
      %p221 = scmp.ne.s32.totalorder %s206, %s220
      %p222 = scmp.eq.s32.totalorder %s23, 0
      %p223 = por %p221, %p222
      %p224 = scmp.le.s32.totalorder 1, %s17
      %p225 = scmp.lt.s32.totalorder %s17, 3
      %p226 = pnand %p224, %p225
      %p227 = pneg %p226
      // Predicated region
      $region9: #{dp_rnn_forward.5} parent=5 // pred_check
        _
      $region10: #{dp_rnn_forward.5} parent=5 // pred_check_branch
        %229 = sbr.rel (%p226) target = $region12
      $region11: #{dp_rnn_forward.5} parent=5 // pred_region
        %s230 = ssub.s32 %s17, 1
        // Predicated region
        $region13: #{dp_rnn_forward.5} parent=11 // pred_check
          %p231 = pneg %p64
        $region14: #{dp_rnn_forward.5} parent=11 // pred_check_branch
          %233 = sbr.rel (%p231) target = $region16
        $region15: #{dp_rnn_forward.5} parent=11 // pred_region
          _
        $region16: #{dp_rnn_forward.5} parent=11 // pred_fallthru
          _
        // Predicated region
        $region17: #{dp_rnn_forward.5} parent=11 // pred_check
          %p234 = pneg %p85
        $region18: #{dp_rnn_forward.5} parent=11 // pred_check_branch
          %236 = sbr.rel (%p234) target = $region20
        $region19: #{dp_rnn_forward.5} parent=11 // pred_region
          _
        $region20: #{dp_rnn_forward.5} parent=11 // pred_fallthru
          _
        // Predicated region
        $region21: #{dp_rnn_forward.5} parent=11 // pred_check
          %p237 = pneg %p106
        $region22: #{dp_rnn_forward.5} parent=11 // pred_check_branch
          %239 = sbr.rel (%p237) target = $region24
        $region23: #{dp_rnn_forward.5} parent=11 // pred_region
          _
        $region24: #{dp_rnn_forward.5} parent=11 // pred_fallthru
          _
        // Predicated region
        $region25: #{dp_rnn_forward.5} parent=11 // pred_check
          %p240 = pneg %p127
        $region26: #{dp_rnn_forward.5} parent=11 // pred_check_branch
          %242 = sbr.rel (%p240) target = $region28
        $region27: #{dp_rnn_forward.5} parent=11 // pred_region
          _
        $region28: #{dp_rnn_forward.5} parent=11 // pred_fallthru
          _
        // Predicated region
        $region29: #{dp_rnn_forward.5} parent=11 // pred_check
          %p243 = pneg %p148
        $region30: #{dp_rnn_forward.5} parent=11 // pred_check_branch
          %245 = sbr.rel (%p243) target = $region32
        $region31: #{dp_rnn_forward.5} parent=11 // pred_region
          _
        $region32: #{dp_rnn_forward.5} parent=11 // pred_fallthru
          _
      $region12: #{dp_rnn_forward.5} parent=5 // pred_fallthru
        _
      %p246 = scmp.lt.s32.totalorder %s17, 2
      // Predicated region
      $region33: #{dp_rnn_forward.5} parent=5 // pred_check
        %p247 = pneg %p246
      $region34: #{dp_rnn_forward.5} parent=5 // pred_check_branch
        %249 = sbr.rel (%p247) target = $region36
      $region35: #{dp_rnn_forward.5} parent=5 // pred_region
        // Predicated region
        $region37: #{dp_rnn_forward.5} parent=35 // pred_check
          %p250 = pneg %p37
        $region38: #{dp_rnn_forward.5} parent=35 // pred_check_branch
          %252 = sbr.rel (%p250) target = $region40
        $region39: #{dp_rnn_forward.5} parent=35 // pred_region
          %s253 = smul.u32 4, %s17
          %p254 = scmp.lt.s32.totalorder %s253, 7
          %s255 = scalar_select %p254, %s253, 7
          %s256 = smul.addr %s255, 2
          %s257 = scalar_lea.vmem %s0, %s256
          %s258 = smul.u32 4, %s17
        $region40: #{dp_rnn_forward.5} parent=35 // pred_fallthru
          _
      $region36: #{dp_rnn_forward.5} parent=5 // pred_fallthru
        _
      %p259 = scmp.le.s32.totalorder 1, %s17
      %p260 = scmp.lt.s32.totalorder %s17, 3
      %p261 = pnand %p259, %p260
      %p262 = pneg %p261
      // Predicated region
      $region41: #{dp_rnn_forward.5} parent=5 // pred_check
        _
      $region42: #{dp_rnn_forward.5} parent=5 // pred_check_branch
        %264 = sbr.rel (%p261) target = $region44
      $region43: #{dp_rnn_forward.5} parent=5 // pred_region
        %s265 = ssub.s32 %s17, 1
        %s266 = smul.u32 4, %s22
        %p267 = scmp.lt.s32.totalorder %s266, 7
        %s268 = scalar_select %p267, %s266, 7
        %s269 = smul.addr %s268, 2
        %s270 = scalar_lea.vmem %s0, %s269
        %p271 = pneg %p43
        %p272 = pneg %p40
        %p273 = pneg %p64
        %p274 = pneg %p61
        %p275 = pneg %p85
        %p276 = pneg %p82
        %p277 = pneg %p106
        %p278 = pneg %p103
        %p279 = pneg %p127
        %p280 = pneg %p124
        %p281 = pneg %p148
        %p282 = pneg %p145
        %p283 = pneg %p174
        %p284 = pneg %p171
        %s285 = smul.u32 4, %s22
        %p286 = scmp.lt.s32.totalorder %s285, 7
        %s287 = scalar_select %p286, %s285, 7
        %s288 = smul.addr %s287, 2
        %s289 = scalar_lea.vmem %s6, %s288
        %p290 = pneg %p195
        %p291 = pneg %p192
        %p292 = pneg %p216
        %p293 = pneg %p213
        %s294 = smul.u32 4, %s22
        %p295 = scmp.lt.s32.totalorder %s294, 7
        %s296 = scalar_select %p295, %s294, 7
        %s297 = smul.addr %s296, 2
        %s298 = scalar_lea.vmem %s0, %s297
        %s299 = smul.u32 4, %s22
        %s300 = smul.u32 4, %s22
        %p301 = scmp.lt.s32.totalorder %s300, 7
        %s302 = scalar_select %p301, %s300, 7
        %s303 = smul.addr %s302, 2
        %s304 = scalar_lea.vmem %s6, %s303
        %s305 = smul.u32 4, %s22
        %p307 = scmp.eq.s32.totalorder %s22, 0
        // Predicated region
        $region45: #{dp_rnn_forward.5} parent=43 // pred_check
          %p308 = pneg %p307
        $region46: #{dp_rnn_forward.5} parent=43 // pred_check_branch
          %310 = sbr.rel (%p308) target = $region48
        $region47: #{dp_rnn_forward.5} parent=43 // pred_region
          %v311 = vld [vmem:[%s4] sm:$0x3]
          %vm312 = vcmask 517120
          %313 = vst.msk [vmem:[#allocation2] sm:$0x3] %vm312, %v311
          %v314 = vld [vmem:[%s5] sm:$0x3]
          %315 = vst.msk [vmem:[#allocation3] sm:$0x3] %vm312, %v314
        $region48: #{dp_rnn_forward.5} parent=43 // pred_fallthru
          _
        %v316 = vld [vmem:[%s298] sm:$0x3]
        %v317 = vld [vmem:[%s298 + $0x2] sm:$0x3]
        %v318 = vld [vmem:[%s298 + $0x4] sm:$0x3]
        %v319 = vld [vmem:[%s298 + $0x6] sm:$0x3]
        %v324 = vcombine.low %v316, %v317
        %v325 = vcombine.low %v318, %v319
        %v327 = vunpack.c.l.s4 1983009808
        %v328 = vunpack.c.0.s8 %v327
        %v329 = vlaneseq
        %v330 = vshrl.u32 %v329, 7
        %v331 = vsub.s32 %v328, %v330
        %v332 = vrot.slane %v324, %v331
        %v334 = vunpack.c.l.s4 1983009808
        %v335 = vunpack.c.0.s8 %v334
        %v336 = vlaneseq
        %v337 = vshrl.u32 %v336, 7
        %v338 = vsub.s32 %v335, %v337
        %v339 = vrot.slane %v325, %v338
        %v340 = vcombine.low %v332, %v339
        %v342 = vpack.c.bf16 %v340, %v340
        %v343 = vld [vmem:[%s1] sm:$0xff]
        %v344 = vld [vmem:[%s1 + $0x8] sm:$0xff]
        %v345 = vld [vmem:[%s1 + $0x10] sm:$0xff]
        %v346 = vld [vmem:[%s1 + $0x18] sm:$0xff]
        %v347 = vld [vmem:[%s1 + $0x20] sm:$0xff]
        %v348 = vld [vmem:[%s1 + $0x28] sm:$0xff]
        %v349 = vld [vmem:[%s1 + $0x30] sm:$0xff]
        %v350 = vld [vmem:[%s1 + $0x38] sm:$0xff]
        %v351 = vld [vmem:[%s3] sm:$0x3]
        %v353 = vlaneseq
        %v354 = vshrl.u32 %v353, 7
        %v355 = vsub.s32 0, %v354
        %v356 = vrot.slane %v351, %v355
        %v357 = vlaneseq
        %v358 = vshrl.u32 %v357, 7
        %v359 = vsub.s32 1, %v358
        %v360 = vrot.slane %v351, %v359
        %v371 = vunpack.c.l.b16 %v343
        %v372 = vunpack.c.h.b16 %v343
        %v373 = vunpack.c.l.b16 %v344
        %v374 = vunpack.c.h.b16 %v344
        %v375 = vunpack.c.l.b16 %v345
        %v376 = vunpack.c.h.b16 %v345
        %v377 = vunpack.c.l.b16 %v346
        %v378 = vunpack.c.h.b16 %v346
        %v379 = vunpack.c.l.b16 %v347
        %v380 = vunpack.c.h.b16 %v347
        %v381 = vunpack.c.l.b16 %v348
        %v382 = vunpack.c.h.b16 %v348
        %v383 = vunpack.c.l.b16 %v349
        %v384 = vunpack.c.h.b16 %v349
        %v385 = vunpack.c.l.b16 %v350
        %v386 = vunpack.c.h.b16 %v350
        %v387 = vpack.c.b16 %v373, %v371
        %v388 = vpack.c.b16 %v374, %v372
        %v389 = vpack.c.b16 %v377, %v375
        %v390 = vpack.c.b16 %v378, %v376
        %v391 = vpack.c.b16 %v381, %v379
        %v392 = vpack.c.b16 %v382, %v380
        %v393 = vpack.c.b16 %v385, %v383
        %v394 = vpack.c.b16 %v386, %v384
        %vm403 = vcmask 523264
        %v405 = vsel %vm403, %v342, 0
        %407 = vmatprep.subr.bf16.mxu0 %v388
        %408 = vmatpush1.bf16.msra.mxu0 %v387
        %409 = vmatprep.subr.bf16.mxu0 %v390
        %410 = vmatpush1.bf16.msra.mxu0 %v389
        %411 = vmatprep.subr.bf16.mxu0 %v392
        %412 = vmatpush1.bf16.msra.mxu0 %v391
        %413 = vmatprep.subr.bf16.mxu0 %v394
        %414 = vmatpush1.bf16.msra.mxu0 %v393
        %415 = vmatprep.subr.bf16.mxu0 0
        %416 = vmatpush1.bf16.msra.mxu0 0
        %417 = vmatprep.subr.bf16.mxu0 0
        %418 = vmatpush1.bf16.msra.mxu0 0
        %419 = vmatprep.subr.bf16.mxu0 0
        %420 = vmatpush1.bf16.msra.mxu0 0
        %421 = vmatprep.subr.bf16.mxu0 0
        %422 = vmatpush1.bf16.msra.mxu0 0
        %423 = vmatprep.subr.bf16.mxu0 0
        %424 = vmatpush1.bf16.msra.mxu0 0
        %425 = vmatprep.subr.bf16.mxu0 0
        %426 = vmatpush1.bf16.msra.mxu0 0
        %427 = vmatprep.subr.bf16.mxu0 0
        %428 = vmatpush1.bf16.msra.mxu0 0
        %429 = vmatprep.subr.bf16.mxu0 0
        %430 = vmatpush1.bf16.msra.mxu0 0
        %431 = vmatprep.subr.bf16.mxu0 0
        %432 = vmatpush1.bf16.msra.mxu0 0
        %433 = vmatprep.subr.bf16.mxu0 0
        %434 = vmatpush1.bf16.msra.mxu0 0
        %435 = vmatprep.subr.bf16.mxu0 0
        %436 = vmatpush1.bf16.msra.mxu0 0
        %437 = vmatprep.subr.bf16.mxu0 0
        %438 = vmatpush1.bf16.msra.mxu0 0
        %439 = vmatprep.mubr.bf16.mxu0 0
        %440 = vmatmul.mubr.bf16.gmra.mrb[0].mxu0 %v405
        %v441 = vpop.f32.mrb[0].mxu0
        %v442 = vadd.f32 %v356, %v441
        %v443 = vpop.f32.mrb[0].mxu0
        %v444 = vadd.f32 %v360, %v443
        %v445 = vpop.f32.mrb[0].mxu0
        %v446 = vpop.f32.mrb[0].mxu0
        %447 = vdwg.mxu0
        %v450 = vcombine.low %v442, %v444
        %v451 = vcombine.high %v442, %v444
        %v453 = vunpack.c.l.s4 1983009808
        %v454 = vunpack.c.0.s8 %v453
        %v455 = vlaneseq
        %v456 = vshrl.u32 %v455, 7
        %v457 = vsub.s32 %v454, %v456
        %v458 = vrot.slane %v450, %v457
        %v460 = vunpack.c.l.s4 1983009808
        %v461 = vunpack.c.0.s8 %v460
        %v462 = vlaneseq
        %v463 = vshrl.u32 %v462, 7
        %v464 = vsub.s32 %v461, %v463
        %v465 = vrot.slane %v451, %v464
        %v466 = vcombine.high %v458, %v458
        %v467 = vcombine.high %v465, %v465
        %472 = vst [vmem:[#allocation4] sm:$0xf] %v458
        %473 = vst [vmem:[#allocation4 + $0x4] sm:$0xf] %v466
        %474 = vst [vmem:[#allocation4 + $0x8] sm:$0xf] %v465
        %475 = vst [vmem:[#allocation4 + $0xc] sm:$0xf] %v467
        %v476 = vld [vmem:[%s2] sm:$0xff]
        %v477 = vld [vmem:[%s2 + $0x8] sm:$0xff]
        %v478 = vld [vmem:[%s2 + $0x10] sm:$0xff]
        %v479 = vld [vmem:[%s2 + $0x18] sm:$0xff]
        %v480 = vld [vmem:[%s2 + $0x20] sm:$0xff]
        %v481 = vld [vmem:[%s2 + $0x28] sm:$0xff]
        %v482 = vld [vmem:[%s2 + $0x30] sm:$0xff]
        %v483 = vld [vmem:[%s2 + $0x38] sm:$0xff]
        %v484 = vld [vmem:[#allocation2] sm:$0x3]
        %v485 = vld [vmem:[#allocation3] sm:$0x3]
        %v486 = vld [vmem:[#allocation4] sm:$0xf]
        %v487 = vpack.c.bf16 %v484, %v484
        %v496 = vunpack.c.l.b16 %v476
        %v497 = vunpack.c.h.b16 %v476
        %v498 = vunpack.c.l.b16 %v477
        %v499 = vunpack.c.h.b16 %v477
        %v500 = vunpack.c.l.b16 %v478
        %v501 = vunpack.c.h.b16 %v478
        %v502 = vunpack.c.l.b16 %v479
        %v503 = vunpack.c.h.b16 %v479
        %v504 = vunpack.c.l.b16 %v480
        %v505 = vunpack.c.h.b16 %v480
        %v506 = vunpack.c.l.b16 %v481
        %v507 = vunpack.c.h.b16 %v481
        %v508 = vunpack.c.l.b16 %v482
        %v509 = vunpack.c.h.b16 %v482
        %v510 = vunpack.c.l.b16 %v483
        %v511 = vunpack.c.h.b16 %v483
        %v512 = vpack.c.b16 %v498, %v496
        %v513 = vpack.c.b16 %v499, %v497
        %v514 = vpack.c.b16 %v502, %v500
        %v515 = vpack.c.b16 %v503, %v501
        %v516 = vpack.c.b16 %v506, %v504
        %v517 = vpack.c.b16 %v507, %v505
        %v518 = vpack.c.b16 %v510, %v508
        %v519 = vpack.c.b16 %v511, %v509
        %v529 = vsel %vm403, %v487, 0
        %531 = vmatprep.subr.bf16.mxu0 %v513
        %532 = vmatpush1.bf16.msra.mxu0 %v512
        %533 = vmatprep.subr.bf16.mxu0 %v515
        %534 = vmatpush1.bf16.msra.mxu0 %v514
        %535 = vmatprep.subr.bf16.mxu0 %v517
        %536 = vmatpush1.bf16.msra.mxu0 %v516
        %537 = vmatprep.subr.bf16.mxu0 %v519
        %538 = vmatpush1.bf16.msra.mxu0 %v518
        %539 = vmatprep.subr.bf16.mxu0 0
        %540 = vmatpush1.bf16.msra.mxu0 0
        %541 = vmatprep.subr.bf16.mxu0 0
        %542 = vmatpush1.bf16.msra.mxu0 0
        %543 = vmatprep.subr.bf16.mxu0 0
        %544 = vmatpush1.bf16.msra.mxu0 0
        %545 = vmatprep.subr.bf16.mxu0 0
        %546 = vmatpush1.bf16.msra.mxu0 0
        %547 = vmatprep.subr.bf16.mxu0 0
        %548 = vmatpush1.bf16.msra.mxu0 0
        %549 = vmatprep.subr.bf16.mxu0 0
        %550 = vmatpush1.bf16.msra.mxu0 0
        %551 = vmatprep.subr.bf16.mxu0 0
        %552 = vmatpush1.bf16.msra.mxu0 0
        %553 = vmatprep.subr.bf16.mxu0 0
        %554 = vmatpush1.bf16.msra.mxu0 0
        %555 = vmatprep.subr.bf16.mxu0 0
        %556 = vmatpush1.bf16.msra.mxu0 0
        %557 = vmatprep.subr.bf16.mxu0 0
        %558 = vmatpush1.bf16.msra.mxu0 0
        %559 = vmatprep.subr.bf16.mxu0 0
        %560 = vmatpush1.bf16.msra.mxu0 0
        %561 = vmatprep.subr.bf16.mxu0 0
        %562 = vmatpush1.bf16.msra.mxu0 0
        %563 = vmatprep.mubr.bf16.mxu0 0
        %564 = vmatmul.mubr.bf16.gmra.mrb[0].mxu0 %v529
        %v565 = vpop.f32.mrb[0].mxu0
        %v566 = vadd.f32 0.0, %v565
        %v567 = vpop.f32.mrb[0].mxu0
        %v568 = vadd.f32 0.0, %v567
        %v569 = vpop.f32.mrb[0].mxu0
        %v570 = vpop.f32.mrb[0].mxu0
        %571 = vdwg.mxu0
        %v574 = vcombine.low %v566, %v568
        %v576 = vunpack.c.l.s4 1983009808
        %v577 = vunpack.c.0.s8 %v576
        %v578 = vlaneseq
        %v579 = vshrl.u32 %v578, 7
        %v580 = vsub.s32 %v577, %v579
        %v581 = vrot.slane %v574, %v580
        %v583 = vadd.f32 %v486, %v581
        %v584 = vxor.u32 %v583, 2147483648
        %v585 = vmul.f32 %v584, 1.442695
        %v586 = vpow.pop %v585
        %v587 = vadd.f32 %v586, 1.0
        %v588 = vrcp.pop %v587
        %v589 = vmul.f32 1.0, %v588
        %v591 = vrot.slane %v583, 2
        %v593 = vtanh.pop %v591
        %594 = vrot.lane.b32.xlu0 %v583, 64
        %v595 = vpop.permute.xlu0 %594
        %v596 = vrot.slane %v595, 2
        %v598 = vxor.u32 %v596, 2147483648
        %v599 = vmul.f32 %v598, 1.442695
        %v600 = vpow.pop %v599
        %v601 = vadd.f32 %v600, 1.0
        %v602 = vrcp.pop %v601
        %v603 = vmul.f32 1.0, %v602
        %v606 = vunpack.c.l.s4 1983009808
        %v607 = vunpack.c.0.s8 %v606
        %v608 = vlaneseq
        %v609 = vshrl.u32 %v608, 7
        %v610 = vsub.s32 %v607, %v609
        %v611 = vrot.slane %v485, %v610
        %612 = vrot.lane.b32.xlu0 %v611, 64
        %v613 = vpop.permute.xlu0 %612
        %v615 = vmul.f32 %v589, %v613
        %v616 = vmul.f32 %v589, %v593
        %618 = vrot.lane.b32.xlu0 %v616, 64
        %v619 = vpop.permute.xlu0 %618
        %v621 = vadd.f32 %v615, %v619
        %v622 = vtanh.pop %v621
        %624 = vrot.lane.b32.xlu0 %v622, 64
        %v625 = vpop.permute.xlu0 %624
        %v627 = vmul.f32 %v603, %v625
        %vm628 = vcmask 517120
        %629 = vst.msk [vmem:[%s304] sm:$0x3] %vm628, %v627
        %s630 = scalar_lea.vmem [#allocation4], 4
        %v631 = vld [vmem:[%s630] sm:$0xf]
        %v632 = vpack.c.bf16 %v627, %v627
        %v634 = vsel %vm403, %v632, 0
        %636 = vmatprep.subr.bf16.mxu0 %v513
        %637 = vmatpush1.bf16.msra.mxu0 %v512
        %638 = vmatprep.subr.bf16.mxu0 %v515
        %639 = vmatpush1.bf16.msra.mxu0 %v514
        %640 = vmatprep.subr.bf16.mxu0 %v517
        %641 = vmatpush1.bf16.msra.mxu0 %v516
        %642 = vmatprep.subr.bf16.mxu0 %v519
        %643 = vmatpush1.bf16.msra.mxu0 %v518
        %644 = vmatprep.subr.bf16.mxu0 0
        %645 = vmatpush1.bf16.msra.mxu0 0
        %646 = vmatprep.subr.bf16.mxu0 0
        %647 = vmatpush1.bf16.msra.mxu0 0
        %648 = vmatprep.subr.bf16.mxu0 0
        %649 = vmatpush1.bf16.msra.mxu0 0
        %650 = vmatprep.subr.bf16.mxu0 0
        %651 = vmatpush1.bf16.msra.mxu0 0
        %652 = vmatprep.subr.bf16.mxu0 0
        %653 = vmatpush1.bf16.msra.mxu0 0
        %654 = vmatprep.subr.bf16.mxu0 0
        %655 = vmatpush1.bf16.msra.mxu0 0
        %656 = vmatprep.subr.bf16.mxu0 0
        %657 = vmatpush1.bf16.msra.mxu0 0
        %658 = vmatprep.subr.bf16.mxu0 0
        %659 = vmatpush1.bf16.msra.mxu0 0
        %660 = vmatprep.subr.bf16.mxu0 0
        %661 = vmatpush1.bf16.msra.mxu0 0
        %662 = vmatprep.subr.bf16.mxu0 0
        %663 = vmatpush1.bf16.msra.mxu0 0
        %664 = vmatprep.subr.bf16.mxu0 0
        %665 = vmatpush1.bf16.msra.mxu0 0
        %666 = vmatprep.subr.bf16.mxu0 0
        %667 = vmatpush1.bf16.msra.mxu0 0
        %668 = vmatprep.mubr.bf16.mxu0 0
        %669 = vmatmul.mubr.bf16.gmra.mrb[0].mxu0 %v634
        %v670 = vpop.f32.mrb[0].mxu0
        %v671 = vadd.f32 0.0, %v670
        %v672 = vpop.f32.mrb[0].mxu0
        %v673 = vadd.f32 0.0, %v672
        %v674 = vpop.f32.mrb[0].mxu0
        %v675 = vpop.f32.mrb[0].mxu0
        %676 = vdwg.mxu0
        %v679 = vcombine.low %v671, %v673
        %v681 = vunpack.c.l.s4 1983009808
        %v682 = vunpack.c.0.s8 %v681
        %v683 = vlaneseq
        %v684 = vshrl.u32 %v683, 7
        %v685 = vsub.s32 %v682, %v684
        %v686 = vrot.slane %v679, %v685
        %v688 = vadd.f32 %v631, %v686
        %v689 = vxor.u32 %v688, 2147483648
        %v690 = vmul.f32 %v689, 1.442695
        %v691 = vpow.pop %v690
        %v692 = vadd.f32 %v691, 1.0
        %v693 = vrcp.pop %v692
        %v694 = vmul.f32 1.0, %v693
        %v696 = vrot.slane %v688, 2
        %v698 = vtanh.pop %v696
        %699 = vrot.lane.b32.xlu0 %v688, 64
        %v700 = vpop.permute.xlu0 %699
        %v701 = vrot.slane %v700, 2
        %v703 = vxor.u32 %v701, 2147483648
        %v704 = vmul.f32 %v703, 1.442695
        %v705 = vpow.pop %v704
        %v706 = vadd.f32 %v705, 1.0
        %v707 = vrcp.pop %v706
        %v708 = vmul.f32 1.0, %v707
        %v709 = vmul.f32 %v694, %v621
        %v710 = vmul.f32 %v694, %v698
        %712 = vrot.lane.b32.xlu0 %v710, 64
        %v713 = vpop.permute.xlu0 %712
        %v715 = vadd.f32 %v709, %v713
        %v716 = vtanh.pop %v715
        %718 = vrot.lane.b32.xlu0 %v716, 64
        %v719 = vpop.permute.xlu0 %718
        %v721 = vmul.f32 %v708, %v719
        %s722 = scalar_lea.vmem %s304, 2
        %723 = vst.msk [vmem:[%s722] sm:$0x3] %vm628, %v721
        %s724 = scalar_lea.vmem [#allocation4], 8
        %v725 = vld [vmem:[%s724] sm:$0xf]
        %v726 = vpack.c.bf16 %v721, %v721
        %v728 = vsel %vm403, %v726, 0
        %730 = vmatprep.subr.bf16.mxu0 %v513
        %731 = vmatpush1.bf16.msra.mxu0 %v512
        %732 = vmatprep.subr.bf16.mxu0 %v515
        %733 = vmatpush1.bf16.msra.mxu0 %v514
        %734 = vmatprep.subr.bf16.mxu0 %v517
        %735 = vmatpush1.bf16.msra.mxu0 %v516
        %736 = vmatprep.subr.bf16.mxu0 %v519
        %737 = vmatpush1.bf16.msra.mxu0 %v518
        %738 = vmatprep.subr.bf16.mxu0 0
        %739 = vmatpush1.bf16.msra.mxu0 0
        %740 = vmatprep.subr.bf16.mxu0 0
        %741 = vmatpush1.bf16.msra.mxu0 0
        %742 = vmatprep.subr.bf16.mxu0 0
        %743 = vmatpush1.bf16.msra.mxu0 0
        %744 = vmatprep.subr.bf16.mxu0 0
        %745 = vmatpush1.bf16.msra.mxu0 0
        %746 = vmatprep.subr.bf16.mxu0 0
        %747 = vmatpush1.bf16.msra.mxu0 0
        %748 = vmatprep.subr.bf16.mxu0 0
        %749 = vmatpush1.bf16.msra.mxu0 0
        %750 = vmatprep.subr.bf16.mxu0 0
        %751 = vmatpush1.bf16.msra.mxu0 0
        %752 = vmatprep.subr.bf16.mxu0 0
        %753 = vmatpush1.bf16.msra.mxu0 0
        %754 = vmatprep.subr.bf16.mxu0 0
        %755 = vmatpush1.bf16.msra.mxu0 0
        %756 = vmatprep.subr.bf16.mxu0 0
        %757 = vmatpush1.bf16.msra.mxu0 0
        %758 = vmatprep.subr.bf16.mxu0 0
        %759 = vmatpush1.bf16.msra.mxu0 0
        %760 = vmatprep.subr.bf16.mxu0 0
        %761 = vmatpush1.bf16.msra.mxu0 0
        %762 = vmatprep.mubr.bf16.mxu0 0
        %763 = vmatmul.mubr.bf16.gmra.mrb[0].mxu0 %v728
        %v764 = vpop.f32.mrb[0].mxu0
        %v765 = vadd.f32 0.0, %v764
        %v766 = vpop.f32.mrb[0].mxu0
        %v767 = vadd.f32 0.0, %v766
        %v768 = vpop.f32.mrb[0].mxu0
        %v769 = vpop.f32.mrb[0].mxu0
        %770 = vdwg.mxu0
        %v773 = vcombine.low %v765, %v767
        %v775 = vunpack.c.l.s4 1983009808
        %v776 = vunpack.c.0.s8 %v775
        %v777 = vlaneseq
        %v778 = vshrl.u32 %v777, 7
        %v779 = vsub.s32 %v776, %v778
        %v780 = vrot.slane %v773, %v779
        %v782 = vadd.f32 %v725, %v780
        %v783 = vxor.u32 %v782, 2147483648
        %v784 = vmul.f32 %v783, 1.442695
        %v785 = vpow.pop %v784
        %v786 = vadd.f32 %v785, 1.0
        %v787 = vrcp.pop %v786
        %v788 = vmul.f32 1.0, %v787
        %v790 = vrot.slane %v782, 2
        %v792 = vtanh.pop %v790
        %793 = vrot.lane.b32.xlu0 %v782, 64
        %v794 = vpop.permute.xlu0 %793
        %v795 = vrot.slane %v794, 2
        %v797 = vxor.u32 %v795, 2147483648
        %v798 = vmul.f32 %v797, 1.442695
        %v799 = vpow.pop %v798
        %v800 = vadd.f32 %v799, 1.0
        %v801 = vrcp.pop %v800
        %v802 = vmul.f32 1.0, %v801
        %v803 = vmul.f32 %v788, %v715
        %v804 = vmul.f32 %v788, %v792
        %806 = vrot.lane.b32.xlu0 %v804, 64
        %v807 = vpop.permute.xlu0 %806
        %v809 = vadd.f32 %v803, %v807
        %v810 = vtanh.pop %v809
        %812 = vrot.lane.b32.xlu0 %v810, 64
        %v813 = vpop.permute.xlu0 %812
        %v815 = vmul.f32 %v802, %v813
        %s816 = scalar_lea.vmem %s304, 4
        %817 = vst.msk [vmem:[%s816] sm:$0x3] %vm628, %v815
        %s818 = scalar_lea.vmem [#allocation4], 12
        %v819 = vld [vmem:[%s818] sm:$0xf]
        %v820 = vpack.c.bf16 %v815, %v815
        %v822 = vsel %vm403, %v820, 0
        %824 = vmatprep.subr.bf16.mxu0 %v513
        %825 = vmatpush1.bf16.msra.mxu0 %v512
        %826 = vmatprep.subr.bf16.mxu0 %v515
        %827 = vmatpush1.bf16.msra.mxu0 %v514
        %828 = vmatprep.subr.bf16.mxu0 %v517
        %829 = vmatpush1.bf16.msra.mxu0 %v516
        %830 = vmatprep.subr.bf16.mxu0 %v519
        %831 = vmatpush1.bf16.msra.mxu0 %v518
        %832 = vmatprep.subr.bf16.mxu0 0
        %833 = vmatpush1.bf16.msra.mxu0 0
        %834 = vmatprep.subr.bf16.mxu0 0
        %835 = vmatpush1.bf16.msra.mxu0 0
        %836 = vmatprep.subr.bf16.mxu0 0
        %837 = vmatpush1.bf16.msra.mxu0 0
        %838 = vmatprep.subr.bf16.mxu0 0
        %839 = vmatpush1.bf16.msra.mxu0 0
        %840 = vmatprep.subr.bf16.mxu0 0
        %841 = vmatpush1.bf16.msra.mxu0 0
        %842 = vmatprep.subr.bf16.mxu0 0
        %843 = vmatpush1.bf16.msra.mxu0 0
        %844 = vmatprep.subr.bf16.mxu0 0
        %845 = vmatpush1.bf16.msra.mxu0 0
        %846 = vmatprep.subr.bf16.mxu0 0
        %847 = vmatpush1.bf16.msra.mxu0 0
        %848 = vmatprep.subr.bf16.mxu0 0
        %849 = vmatpush1.bf16.msra.mxu0 0
        %850 = vmatprep.subr.bf16.mxu0 0
        %851 = vmatpush1.bf16.msra.mxu0 0
        %852 = vmatprep.subr.bf16.mxu0 0
        %853 = vmatpush1.bf16.msra.mxu0 0
        %854 = vmatprep.subr.bf16.mxu0 0
        %855 = vmatpush1.bf16.msra.mxu0 0
        %856 = vmatprep.mubr.bf16.mxu0 0
        %857 = vmatmul.mubr.bf16.gmra.mrb[0].mxu0 %v822
        %v858 = vpop.f32.mrb[0].mxu0
        %v859 = vadd.f32 0.0, %v858
        %v860 = vpop.f32.mrb[0].mxu0
        %v861 = vadd.f32 0.0, %v860
        %v862 = vpop.f32.mrb[0].mxu0
        %v863 = vpop.f32.mrb[0].mxu0
        %864 = vdwg.mxu0
        %v867 = vcombine.low %v859, %v861
        %v869 = vunpack.c.l.s4 1983009808
        %v870 = vunpack.c.0.s8 %v869
        %v871 = vlaneseq
        %v872 = vshrl.u32 %v871, 7
        %v873 = vsub.s32 %v870, %v872
        %v874 = vrot.slane %v867, %v873
        %v876 = vadd.f32 %v819, %v874
        %v877 = vxor.u32 %v876, 2147483648
        %v878 = vmul.f32 %v877, 1.442695
        %v879 = vpow.pop %v878
        %v880 = vadd.f32 %v879, 1.0
        %v881 = vrcp.pop %v880
        %v882 = vmul.f32 1.0, %v881
        %v884 = vrot.slane %v876, 2
        %v886 = vtanh.pop %v884
        %887 = vrot.lane.b32.xlu0 %v876, 64
        %v888 = vpop.permute.xlu0 %887
        %v889 = vrot.slane %v888, 2
        %v891 = vxor.u32 %v889, 2147483648
        %v892 = vmul.f32 %v891, 1.442695
        %v893 = vpow.pop %v892
        %v894 = vadd.f32 %v893, 1.0
        %v895 = vrcp.pop %v894
        %v896 = vmul.f32 1.0, %v895
        %v897 = vmul.f32 %v882, %v809
        %v898 = vmul.f32 %v882, %v886
        %900 = vrot.lane.b32.xlu0 %v898, 64
        %v901 = vpop.permute.xlu0 %900
        %v903 = vadd.f32 %v897, %v901
        %v904 = vtanh.pop %v903
        %906 = vrot.lane.b32.xlu0 %v904, 64
        %v907 = vpop.permute.xlu0 %906
        %v909 = vmul.f32 %v896, %v907
        %s910 = scalar_lea.vmem %s304, 6
        %911 = vst.msk [vmem:[%s910] sm:$0x3] %vm628, %v909
        %912 = vst.msk [vmem:[#allocation2] sm:$0x3] %vm628, %v909
        %v915 = vunpack.c.l.s4 1983009808
        %v916 = vunpack.c.0.s8 %v915
        %v917 = vlaneseq
        %v918 = vshrl.u32 %v917, 7
        %v919 = vsub.s32 %v916, %v918
        %v920 = vrot.slane %v903, %v919
        %921 = vrot.lane.b32.xlu0 %v920, 64
        %v922 = vpop.permute.xlu0 %921
        %924 = vst.msk [vmem:[#allocation3] sm:$0x3] %vm628, %v922
        %p925 = scmp.eq.s32.totalorder %s22, 1
        // Predicated region
        $region49: #{dp_rnn_forward.5} parent=43 // pred_check
          %p926 = pneg %p925
        $region50: #{dp_rnn_forward.5} parent=43 // pred_check_branch
          %928 = sbr.rel (%p926) target = $region52
        $region51: #{dp_rnn_forward.5} parent=43 // pred_region
          %929 = vst.msk [vmem:[#allocation5] sm:$0x3] %vm628, %v909
          %930 = vst.msk [vmem:[#allocation7] sm:$0x3] %vm628, %v922
        $region52: #{dp_rnn_forward.5} parent=43 // pred_fallthru
          _
        %s931 = smul.u32 4, %s22
        %p932 = scmp.lt.s32.totalorder %s931, 7
        %s933 = scalar_select %p932, %s931, 7
        %s934 = smul.addr %s933, 2
        %s935 = scalar_lea.vmem %s6, %s934
        // Predicated region
        $region53: #{dp_rnn_forward.5} parent=43 // pred_check
          %p936 = pneg %p171
        $region54: #{dp_rnn_forward.5} parent=43 // pred_check_branch
          %938 = sbr.rel (%p936) target = $region56
        $region55: #{dp_rnn_forward.5} parent=43 // pred_region
          %s939 = smul.u32 4, %s22
        $region56: #{dp_rnn_forward.5} parent=43 // pred_fallthru
          _
        // Predicated region
        $region57: #{dp_rnn_forward.5} parent=43 // pred_check
          %p940 = pneg %p192
        $region58: #{dp_rnn_forward.5} parent=43 // pred_check_branch
          %942 = sbr.rel (%p940) target = $region60
        $region59: #{dp_rnn_forward.5} parent=43 // pred_region
          %s944 = ssub.s32 32, 32
          %945 = vsyncadd [#allocation6], %s944
          %s947 = sshll.u32 [#allocation5], 4
          %s948 = int_to_ptr.vmem [resolvable:$true] %s947
          %950 = dma.vmem_to_hbm [thread:$0]  %s948, 32, %s7, [#allocation6]
        $region60: #{dp_rnn_forward.5} parent=43 // pred_fallthru
          _
        // Predicated region
        $region61: #{dp_rnn_forward.5} parent=43 // pred_check
          %p951 = pneg %p213
        $region62: #{dp_rnn_forward.5} parent=43 // pred_check_branch
          %953 = sbr.rel (%p951) target = $region64
        $region63: #{dp_rnn_forward.5} parent=43 // pred_region
          %s955 = ssub.s32 32, 32
          %956 = vsyncadd [#allocation8], %s955
          %s958 = sshll.u32 [#allocation7], 4
          %s959 = int_to_ptr.vmem [resolvable:$true] %s958
          %961 = dma.vmem_to_hbm [thread:$0]  %s959, 32, %s8, [#allocation8]
        $region64: #{dp_rnn_forward.5} parent=43 // pred_fallthru
          _
        // Predicated region
        $region65: #{dp_rnn_forward.5} parent=43 // pred_check
          %p962 = pneg %p192
        $region66: #{dp_rnn_forward.5} parent=43 // pred_check_branch
          %964 = sbr.rel (%p962) target = $region68
        $region67: #{dp_rnn_forward.5} parent=43 // pred_region
          %965 = dma.done [#allocation6], 32
        $region68: #{dp_rnn_forward.5} parent=43 // pred_fallthru
          _
        // Predicated region
        $region69: #{dp_rnn_forward.5} parent=43 // pred_check
          %p966 = pneg %p213
        $region70: #{dp_rnn_forward.5} parent=43 // pred_check_branch
          %968 = sbr.rel (%p966) target = $region72
        $region71: #{dp_rnn_forward.5} parent=43 // pred_region
          %969 = dma.done [#allocation8], 32
        $region72: #{dp_rnn_forward.5} parent=43 // pred_fallthru
          _
      $region44: #{dp_rnn_forward.5} parent=5 // pred_fallthru
        _
      %p970 = scmp.le.s32.totalorder 2, %s17
      // Predicated region
      $region73: #{dp_rnn_forward.5} parent=5 // pred_check
        %p971 = pneg %p970
      $region74: #{dp_rnn_forward.5} parent=5 // pred_check_branch
        %973 = sbr.rel (%p971) target = $region76
      $region75: #{dp_rnn_forward.5} parent=5 // pred_region
        %s974 = ssub.s32 %s17, 2
        // Predicated region
        $region77: #{dp_rnn_forward.5} parent=75 // pred_check
          %p975 = pneg %p177
        $region78: #{dp_rnn_forward.5} parent=75 // pred_check_branch
          %977 = sbr.rel (%p975) target = $region80
        $region79: #{dp_rnn_forward.5} parent=75 // pred_region
          %s978 = smul.u32 4, %s23
          %p979 = scmp.lt.s32.totalorder %s978, 7
          %s980 = scalar_select %p979, %s978, 7
          %s981 = smul.addr %s980, 2
          %s982 = scalar_lea.vmem %s6, %s981
        $region80: #{dp_rnn_forward.5} parent=75 // pred_fallthru
          _
      $region76: #{dp_rnn_forward.5} parent=5 // pred_fallthru
        _
    $region6: #{dp_rnn_forward.5} parent=1 // loop_footer
      %s21 = sadd.s32 1, %s17
    $region7: #{dp_rnn_forward.5} parent=1 // loop_footer_branch
      %16 = sbr.rel target = $region3
    $region8: #{dp_rnn_forward.5} parent=1 // loop_exit
      _
    %983 = vsyncpa [#allocation6], 1
    %s984 = scalar_lea.sflag [#allocation6], 1
    %985 = vsyncpa %s984, 1
    %986 = vsyncpa [#allocation8], 1

</llo_original>
